<compile_context>
chip_gen: v5e
topology: v5e:2x2
jax: 0.10.0
libtpu: 0.0.40
codegen_flags: <defaults>
</compile_context>

<pallas_src>
import math

import jax
import jax.numpy as jnp
from jax import lax
from jax.experimental import pallas as pl
from jax.experimental.pallas import tpu as pltpu

_NEG = -(2.0 ** 100)   # "minus infinity" exactly representable in both bf16 and f32


def _bcast_heads_to_cols(x, c):
    """[tE, H] -> [tE, H*c] with column h*c+j = x[:, h] (f32, VPU broadcasts)."""
    te, h = x.shape
    return jnp.concatenate(
        [jnp.broadcast_to(x[:, i:i + 1], (te, c)) for i in range(h)], axis=1)


def _bcast_heads_to_rows(x, c):
    """[H, Nb] -> [H*c, Nb] with row h*c+j = x[h, :] (f32, sublane broadcasts)."""
    h, nb = x.shape
    return jnp.concatenate(
        [jnp.broadcast_to(x[i:i + 1, :], (c, nb)) for i in range(h)], axis=0)


def _gae_kernel(ei_ref, relt_ref, msg_ref,
                kv_ref, q_ref, we_ref, wt_ref, bt_ref, p_ref,
                out_ref,
                m_ref, l_ref):
    f32, bf16 = jnp.float32, jnp.bfloat16
    d = pl.program_id(0)                  # destination-node block (parallel)
    i = pl.program_id(1)                  # edge tile (reduction)
    n_e = pl.num_programs(1)

    N = kv_ref.shape[0]
    HC = q_ref.shape[1]
    H = p_ref.shape[1]
    C = HC // H
    Nb = m_ref.shape[1]
    tE = ei_ref.shape[0]
    Td = wt_ref.shape[1]
    Dm = msg_ref.shape[1]

    # ---- start of this dst-block's edge stream: init resident state ----
    @pl.when(i == 0)
    def _init():
        m_ref[...] = jnp.full_like(m_ref, _NEG)
        l_ref[...] = jnp.zeros_like(l_ref)
        out_ref[...] = jnp.zeros_like(out_ref)

    # ---- TimeEncoder + split lin_edge (static ref slices, no lane concat) ----
    t_enc = jnp.cos(relt_ref[...] * wt_ref[...] + bt_ref[...])            # [tE, Td] f32
    e_proj = (jnp.dot(t_enc.astype(bf16), we_ref[pl.ds(0, Td), :],
                      preferred_element_type=f32)
              + jnp.dot(msg_ref[...], we_ref[pl.ds(Td, Dm), :],
                        preferred_element_type=f32))                      # [tE, HC] f32

    # ---- 0/1 selectors (bool -> bf16 directly; exact) ----
    dst = ei_ref[:, 0:1]                                                  # [tE, 1] int32
    src = ei_ref[:, 1:2]
    node0 = d * Nb
    lane_src = lax.broadcasted_iota(jnp.int32, (tE, N), 1)
    onehot_src = (src == lane_src).astype(bf16)                           # [tE, N]
    lane_dst = lax.broadcasted_iota(jnp.int32, (tE, Nb), 1) + node0
    is_dst = dst == lane_dst                                              # bool [tE, Nb]
    onehot_dst = is_dst.astype(bf16)

    # ---- gather q by destination (this block), fused k|v by source (full N) ----
    q_e = jnp.dot(onehot_dst, q_ref[...], preferred_element_type=f32)     # [tE, HC]
    kv_e = jnp.dot(onehot_src, kv_ref[...], preferred_element_type=f32)   # [tE, 2*HC]
    k_e = kv_e[:, 0:HC] + e_proj
    v_e = kv_e[:, HC:2 * HC] + e_proj

    # ---- per-head attention logits (head-sum via [HC, H] 0/1 matmul) ----
    scale = 1.0 / math.sqrt(C)
    prod = (q_e * k_e) * scale                                            # [tE, HC] f32
    logits = jnp.dot(prod.astype(bf16), p_ref[...],
                     preferred_element_type=f32)                          # [tE, H]

    # ---- streaming segment softmax: per-destination running max ----
    tile_max = jnp.concatenate(
        [jnp.max(jnp.where(is_dst, logits[:, h:h + 1], _NEG),
                 axis=0, keepdims=True) for h in range(H)], axis=0)       # [H, Nb]

    m_old = m_ref[...]
    # bf16 round-trip so the stored max matches the bf16 value gathered below
    m_new = jnp.maximum(m_old, tile_max).astype(bf16).astype(f32)
    corr = jnp.exp(m_old - m_new)                                         # [H, Nb] f32
    m_ref[...] = m_new

    # gather per-destination max back to edges (one-hot is exact in bf16)
    m_e = lax.dot_general(onehot_dst, m_new.astype(bf16),
                          (((1,), (1,)), ((), ())),
                          preferred_element_type=f32)                     # [tE, H]
    # mask padded / out-of-block edges explicitly (no exp/NaN hazard)
    valid = jnp.logical_and(dst >= node0, dst < node0 + Nb)               # [tE, 1] bool
    p_e = jnp.where(valid, jnp.exp(logits - m_e), 0.0)                    # [tE, H] f32

    # head-broadcast the softmax weights to channels in f32 (VPU, off the MXU)
    p_full = _bcast_heads_to_cols(p_e, C)                                 # [tE, HC] f32
    wv = (v_e * p_full).astype(bf16)                                      # [tE, HC] bf16

    # ---- fused destination scatter: numerator + denominator in one matmul ----
    scat = jnp.concatenate([wv, p_e.astype(bf16)], axis=1)                # [tE, HC+H]
    add = lax.dot_general(scat, onehot_dst, (((0,), (0,)), ((), ())),
                          preferred_element_type=f32)                     # [HC+H, Nb]
    acc_add = add[0:HC, :]                                                # [HC, Nb]
    l_add = add[HC:HC + H, :]                                             # [H, Nb]

    l_ref[...] = corr * l_ref[...] + l_add
    out_ref[...] = _bcast_heads_to_rows(corr, C) * out_ref[...] + acc_add

    # ---- last edge tile: normalize the resident output block in place ----
    @pl.when(i == n_e - 1)
    def _finalize():
        l = l_ref[...]
        inv_l = jnp.where(l > 0.0,
                          pl.reciprocal(jnp.maximum(l, 1e-30), approx=True),
                          0.0)                                            # [H, Nb] f32
        out_ref[...] = out_ref[...] * _bcast_heads_to_rows(inv_l, C)


def init_params(key, in_channels, out_channels, msg_dim, time_dim, heads=8):
    c = out_channels // heads
    hc = heads * c
    edge_dim = msg_dim + time_dim
    ks = jax.random.split(key, 11)

    def lin_w(k, fan_in, fan_out):
        bound = 1.0 / math.sqrt(fan_in)
        return jax.random.uniform(k, (fan_in, fan_out), jnp.float32, -bound, bound)

    def lin_b(k, fan_in, fan_out):
        bound = 1.0 / math.sqrt(fan_in)
        return jax.random.uniform(k, (1, fan_out), jnp.float32, -bound, bound)

    return dict(
        wq=lin_w(ks[0], in_channels, hc), bq=lin_b(ks[1], in_channels, hc),
        wk=lin_w(ks[2], in_channels, hc), bk=lin_b(ks[3], in_channels, hc),
        wv=lin_w(ks[4], in_channels, hc), bv=lin_b(ks[5], in_channels, hc),
        wskip=lin_w(ks[6], in_channels, hc), bskip=lin_b(ks[7], in_channels, hc),
        we=lin_w(ks[8], edge_dim, hc),                     # lin_edge (bias=False)
        wt=lin_w(ks[9], 1, time_dim), bt=lin_b(ks[10], 1, time_dim),  # TimeEncoder
    )


def graph_attention_embedding(params, feats, x, last_update, edge_index, t, msg,
                              *, out_channels, heads, time_dim,
                              edge_tile=None, dst_block=None):
    assert out_channels % heads == 0
    N = feats.shape[0]
    E = edge_index.shape[1]
    C = out_channels // heads
    HC = heads * C
    src, dst = edge_index[0], edge_index[1]
    Td = time_dim

    # ---- glue (tiny XLA ops): rel_t, node-input concat, hoisted projections ----
    if last_update is not None:
        lu = jnp.max(last_update, axis=1) if last_update.ndim == 2 else last_update
        rel_t = lu[src] - t
    else:
        rel_t = t
    rel_t = rel_t.astype(feats.dtype).reshape(E, 1)
    z = jnp.concatenate([x, feats], axis=-1) if x is not None else feats
    Dm = msg.shape[1]

    # Node projections hoisted out of the kernel (overlap with first edge DMAs).
    q = z @ params["wq"] + params["bq"]                    # [N, HC]
    k = z @ params["wk"] + params["bk"]
    v = z @ params["wv"] + params["bv"]
    skip = z @ params["wskip"] + params["bskip"]           # added after the kernel
    kv = jnp.concatenate([k, v], axis=1)                   # [N, 2*HC]

    # head-sum 0/1 matrix [HC, H] (exact in bf16), used only for the logit head-sum
    p_sum = jnp.repeat(jnp.eye(heads, dtype=jnp.float32), C, axis=0)

    # ---- edge tiling (reduction grid axis); pad E to a tile multiple ----
    if edge_tile is None:
        edge_tile = 512
    edge_tile = max(8, min(edge_tile, ((E + 7) // 8) * 8))
    edge_tile = (edge_tile // 8) * 8
    E_pad = ((E + edge_tile - 1) // edge_tile) * edge_tile
    pad = E_pad - E
    # padded edges get dst = N (matches no lane -> zero one-hot row -> masked out)
    if pad:
        dst_p = jnp.concatenate([dst, jnp.full((pad,), N, dst.dtype)])
        src_p = jnp.concatenate([src, jnp.zeros((pad,), src.dtype)])
        relt_p = jnp.concatenate([rel_t, jnp.zeros((pad, 1), rel_t.dtype)], axis=0)
        msg_p = jnp.concatenate([msg, jnp.zeros((pad, Dm), msg.dtype)], axis=0)
    else:
        dst_p, src_p, relt_p, msg_p = dst, src, rel_t, msg
    ei = jnp.stack([dst_p.astype(jnp.int32), src_p.astype(jnp.int32)], axis=1)  # [E_pad, 2]

    # ---- destination-node blocking (parallel axis; megacore / large-N VMEM bound) ----
    if dst_block is not None and dst_block % 128 == 0 and N % dst_block == 0 and dst_block < N:
        Nb = dst_block
    else:
        Nb = N
    n_dst = N // Nb
    n_tiles = E_pad // edge_tile

    bf16 = jnp.bfloat16
    args = (
        ei,
        relt_p.astype(jnp.float32),
        msg_p.astype(bf16),
        kv.astype(bf16),
        q.astype(bf16),
        params["we"].astype(bf16),
        params["wt"].astype(jnp.float32), params["bt"].astype(jnp.float32),
        p_sum.astype(bf16),
    )

    res = pl.Buffered(1)   # never-refetched resident blocks: single-buffered
    in_specs = [
        pl.BlockSpec((edge_tile, 2), lambda d, i: (i, 0)),           # dst|src packed
        pl.BlockSpec((edge_tile, 1), lambda d, i: (i, 0)),           # rel_t
        pl.BlockSpec((edge_tile, Dm), lambda d, i: (i, 0)),          # msg
        pl.BlockSpec((N, 2 * HC), lambda d, i: (0, 0), pipeline_mode=res),   # k|v (full N)
        pl.BlockSpec((Nb, HC), lambda d, i: (d, 0),
                     pipeline_mode=(res if n_dst == 1 else None)),   # q (dst block)
        pl.BlockSpec((Td + Dm, HC), lambda d, i: (0, 0), pipeline_mode=res),  # lin_edge W
        pl.BlockSpec((1, Td), lambda d, i: (0, 0), pipeline_mode=res),        # time W
        pl.BlockSpec((1, Td), lambda d, i: (0, 0), pipeline_mode=res),        # time b
        pl.BlockSpec((HC, heads), lambda d, i: (0, 0), pipeline_mode=res),    # head-sum
    ]
    grid_spec = pltpu.PrefetchScalarGridSpec(
        num_scalar_prefetch=0,
        grid=(n_dst, n_tiles),
        in_specs=in_specs,
        out_specs=pl.BlockSpec((HC, Nb), lambda d, i: (0, d)),       # lane-dense, resident
        scratch_shapes=[
            pltpu.VMEM((heads, Nb), jnp.float32),    # running segment max  m[h, n]
            pltpu.VMEM((heads, Nb), jnp.float32),    # running denominator  l[h, n]
        ],
    )
    att_t = pl.pallas_call(
        _gae_kernel,
        out_shape=jax.ShapeDtypeStruct((HC, N), jnp.float32),
        grid_spec=grid_spec,
        compiler_params=pltpu.CompilerParams(
            dimension_semantics=("parallel", "arbitrary"),
            vmem_limit_bytes=48 * 1024 * 1024,       # headroom below v7x's 64 MiB VMEM
        ),
    )(*args)

    return att_t.T + skip


def reference(params, feats, x, last_update, edge_index, t, msg,
              *, out_channels, heads, time_dim):
    """Pure-JAX f32 reference matching TransformerConv(edge_dim=...) semantics."""
    src, dst = edge_index[0], edge_index[1]
    N, E = feats.shape[0], src.shape[0]
    c = out_channels // heads
    if last_update is not None:
        lu = jnp.max(last_update, axis=1) if last_update.ndim == 2 else last_update
        rel_t = lu[src] - t
    else:
        rel_t = t
    rel_t = rel_t.astype(feats.dtype).reshape(E, 1)
    z = jnp.concatenate([x, feats], axis=-1) if x is not None else feats
    t_enc = jnp.cos(rel_t @ params["wt"] + params["bt"])
    edge_attr = jnp.concatenate([t_enc, msg], axis=-1)
    e_proj = (edge_attr @ params["we"]).reshape(E, heads, c)
    q = (z @ params["wq"] + params["bq"]).reshape(N, heads, c)
    k = (z @ params["wk"] + params["bk"]).reshape(N, heads, c)
    v = (z @ params["wv"] + params["bv"]).reshape(N, heads, c)
    skip = z @ params["wskip"] + params["bskip"]
    q_e, k_e, v_e = q[dst], k[src] + e_proj, v[src] + e_proj
    logits = (q_e * k_e).sum(-1) / math.sqrt(c)                    # [E, H]
    seg_max = jax.ops.segment_max(logits, dst, num_segments=N)
    a = jnp.exp(logits - seg_max[dst])
    a = a / jax.ops.segment_sum(a, dst, num_segments=N)[dst]
    out = jax.ops.segment_sum(v_e * a[..., None], dst, num_segments=N)
    return out.reshape(N, heads * c) + skip


if __name__ == "__main__":
    key = jax.random.PRNGKey(0)
    N, E = 8, 16
    mem_dim, feat_dim = 16, 16        # x (memory) and feats
    in_channels = mem_dim + feat_dim  # conv input = cat([x, feats])
    out_channels = 32
    heads = 8
    msg_dim = 16
    time_dim = 8                      # time_enc.out_channels

    kp, kf, kx, klu, kei, kt, km = jax.random.split(key, 7)
    params = init_params(kp, in_channels, out_channels, msg_dim, time_dim, heads)
    feats = jax.random.normal(kf, (N, feat_dim), jnp.float32)
    x = jax.random.normal(kx, (N, mem_dim), jnp.float32)
    last_update = jax.random.uniform(klu, (N,), jnp.float32, 0.0, 100.0)
    edge_index = jax.random.randint(kei, (2, E), 0, N)
    t = jax.random.uniform(kt, (E,), jnp.float32, 0.0, 100.0)
    msg = jax.random.normal(km, (E, msg_dim), jnp.float32)

    # edge_tile=8 -> 2 edge tiles, so the streaming-softmax accumulation is exercised
    out = graph_attention_embedding(params, feats, x, last_update, edge_index, t, msg,
                                    out_channels=out_channels, heads=heads,
                                    time_dim=time_dim, edge_tile=8)
    out = jax.block_until_ready(out)

    ref = reference(params, feats, x, last_update, edge_index, t, msg,
                    out_channels=out_channels, heads=heads, time_dim=time_dim)
    assert out.shape == (N, out_channels)
    err = float(jnp.max(jnp.abs(out - ref)))
    # bf16 MXU operands vs. f32 reference -> relaxed tolerance
    assert jnp.allclose(out, ref, atol=5e-2, rtol=5e-2), err
    print("KERNEL_OK")
</pallas_src>

<mosaic_0001>
module attributes {stable_mosaic.version = 11 : i64} {
  func.func @_gae_kernel(%arg0: i32, %arg1: i32, %arg2: memref<8x2xi32, #tpu.memory_space<vmem>>, %arg3: memref<8x1xf32, #tpu.memory_space<vmem>>, %arg4: memref<8x16xbf16, #tpu.memory_space<vmem>>, %arg5: memref<8x64xbf16, #tpu.memory_space<vmem>>, %arg6: memref<8x32xbf16, #tpu.memory_space<vmem>>, %arg7: memref<24x32xbf16, #tpu.memory_space<vmem>>, %arg8: memref<1x8xf32, #tpu.memory_space<vmem>>, %arg9: memref<1x8xf32, #tpu.memory_space<vmem>>, %arg10: memref<32x8xbf16, #tpu.memory_space<vmem>>, %arg11: memref<32x8xf32, #tpu.memory_space<vmem>>, %arg12: memref<8x8xf32, #tpu.memory_space<vmem>>, %arg13: memref<8x8xf32, #tpu.memory_space<vmem>>) attributes {dimension_semantics = [#tpu.dimension_semantics<parallel>, #tpu.dimension_semantics<arbitrary>], iteration_bounds = array<i64: 1, 2>, scalar_prefetch = 0 : i64, scratch_operands = 2 : i64, tpu.core_type = #tpu.core_type<tc>, window_params = [{transform_indices = @transform_0, window_bounds = array<i64: 8, 2>}, {transform_indices = @transform_1, window_bounds = array<i64: 8, 1>}, {transform_indices = @transform_2, window_bounds = array<i64: 8, 16>}, {pipeline_mode = #tpu.pipeline_mode<synchronous>, transform_indices = @transform_3, window_bounds = array<i64: 8, 64>}, {pipeline_mode = #tpu.pipeline_mode<synchronous>, transform_indices = @transform_4, window_bounds = array<i64: 8, 32>}, {pipeline_mode = #tpu.pipeline_mode<synchronous>, transform_indices = @transform_5, window_bounds = array<i64: 24, 32>}, {pipeline_mode = #tpu.pipeline_mode<synchronous>, transform_indices = @transform_6, window_bounds = array<i64: 1, 8>}, {pipeline_mode = #tpu.pipeline_mode<synchronous>, transform_indices = @transform_7, window_bounds = array<i64: 1, 8>}, {pipeline_mode = #tpu.pipeline_mode<synchronous>, transform_indices = @transform_8, window_bounds = array<i64: 32, 8>}, {transform_indices = @transform_9, window_bounds = array<i64: 32, 8>}]} {
    %c0_i32 = arith.constant 0 : i32
    %0 = arith.cmpi eq, %arg1, %c0_i32 : i32
    %1 = arith.extui %0 : i1 to i32
    %c0_i32_0 = arith.constant 0 : i32
    %2 = arith.cmpi ne, %1, %c0_i32_0 : i32
    scf.if %2 {
      %cst_58 = arith.constant -1.2676506E+30 : f32
      %196 = vector.broadcast %cst_58 : f32 to vector<8x8xf32>
      %c0_59 = arith.constant 0 : index
      %c0_60 = arith.constant 0 : index
      %197 = vector.load %arg12[%c0_59, %c0_60] : memref<8x8xf32, #tpu.memory_space<vmem>>, vector<8x8xf32>
      tpu.vector_store %arg12[%c0_59, %c0_60], %196 {strides = array<i32>} : memref<8x8xf32, #tpu.memory_space<vmem>>, vector<8x8xf32>,
      %cst_61 = arith.constant 0.000000e+00 : f32
      %198 = vector.broadcast %cst_61 : f32 to vector<8x8xf32>
      %c0_62 = arith.constant 0 : index
      %c0_63 = arith.constant 0 : index
      %199 = vector.load %arg13[%c0_62, %c0_63] : memref<8x8xf32, #tpu.memory_space<vmem>>, vector<8x8xf32>
      tpu.vector_store %arg13[%c0_62, %c0_63], %198 {strides = array<i32>} : memref<8x8xf32, #tpu.memory_space<vmem>>, vector<8x8xf32>,
      %cst_64 = arith.constant 0.000000e+00 : f32
      %200 = vector.broadcast %cst_64 : f32 to vector<32x8xf32>
      %c0_65 = arith.constant 0 : index
      %c0_66 = arith.constant 0 : index
      %201 = vector.load %arg11[%c0_65, %c0_66] : memref<32x8xf32, #tpu.memory_space<vmem>>, vector<32x8xf32>
      tpu.vector_store %arg11[%c0_65, %c0_66], %200 {strides = array<i32>} : memref<32x8xf32, #tpu.memory_space<vmem>>, vector<32x8xf32>,
    } else {
    }
    %c0 = arith.constant 0 : index
    %c0_1 = arith.constant 0 : index
    %3 = vector.load %arg3[%c0, %c0_1] : memref<8x1xf32, #tpu.memory_space<vmem>>, vector<8x1xf32>
    %c0_2 = arith.constant 0 : index
    %c0_3 = arith.constant 0 : index
    %4 = vector.load %arg8[%c0_2, %c0_3] : memref<1x8xf32, #tpu.memory_space<vmem>>, vector<1x8xf32>
    %5 = vector.broadcast %3 : vector<8x1xf32> to vector<8x8xf32>
    %6 = vector.broadcast %4 : vector<1x8xf32> to vector<8x8xf32>
    %7 = arith.mulf %5, %6 : vector<8x8xf32>
    %c0_4 = arith.constant 0 : index
    %c0_5 = arith.constant 0 : index
    %8 = vector.load %arg9[%c0_4, %c0_5] : memref<1x8xf32, #tpu.memory_space<vmem>>, vector<1x8xf32>
    %9 = vector.broadcast %8 : vector<1x8xf32> to vector<8x8xf32>
    %10 = arith.addf %7, %9 : vector<8x8xf32>
    %11 = math.cos %10 : vector<8x8xf32>
    %12 = arith.truncf %11 : vector<8x8xf32> to vector<8x8xbf16>
    %c0_6 = arith.constant 0 : index
    %c0_7 = arith.constant 0 : index
    %13 = vector.load %arg7[%c0_6, %c0_7] : memref<24x32xbf16, #tpu.memory_space<vmem>>, vector<8x32xbf16>
    %cst = arith.constant dense<0.000000e+00> : vector<8x32xf32>
    %14 = tpu.matmul %12, %13, %cst {dimension_numbers = #tpu.dot_dimension_numbers<[1], [0], [0], [1], [0, 0, 1, 1], [], []>} : vector<8x8xbf16>, vector<8x32xbf16>, vector<8x32xf32> -> vector<8x32xf32>
    %c0_8 = arith.constant 0 : index
    %c0_9 = arith.constant 0 : index
    %15 = vector.load %arg4[%c0_8, %c0_9] : memref<8x16xbf16, #tpu.memory_space<vmem>>, vector<8x16xbf16>
    %c8 = arith.constant 8 : index
    %c0_10 = arith.constant 0 : index
    %16 = vector.load %arg7[%c8, %c0_10] : memref<24x32xbf16, #tpu.memory_space<vmem>>, vector<16x32xbf16>
    %cst_11 = arith.constant dense<0.000000e+00> : vector<8x32xf32>
    %17 = tpu.matmul %15, %16, %cst_11 {dimension_numbers = #tpu.dot_dimension_numbers<[1], [0], [0], [1], [0, 0, 1, 1], [], []>} : vector<8x16xbf16>, vector<16x32xbf16>, vector<8x32xf32> -> vector<8x32xf32>
    %18 = arith.addf %14, %17 : vector<8x32xf32>
    %c0_12 = arith.constant 0 : index
    %c0_13 = arith.constant 0 : index
    %19 = vector.load %arg2[%c0_12, %c0_13] : memref<8x2xi32, #tpu.memory_space<vmem>>, vector<8x1xi32>
    %c0_14 = arith.constant 0 : index
    %c1 = arith.constant 1 : index
    %20 = vector.load %arg2[%c0_14, %c1] : memref<8x2xi32, #tpu.memory_space<vmem>>, vector<8x1xi32>
    %c8_i32 = arith.constant 8 : i32
    %21 = arith.muli %arg0, %c8_i32 : i32
    %22 = tpu.iota {dimensions = array<i32: 1>} : vector<8x8xi32>
    %23 = vector.broadcast %20 : vector<8x1xi32> to vector<8x8xi32>
    %24 = arith.cmpi eq, %23, %22 : vector<8x8xi32>
    %25 = arith.extui %24 : vector<8x8xi1> to vector<8x8xi32>
    %26 = arith.sitofp %25 : vector<8x8xi32> to vector<8x8xf32>
    %27 = arith.truncf %26 : vector<8x8xf32> to vector<8x8xbf16>
    %28 = tpu.iota {dimensions = array<i32: 1>} : vector<8x8xi32>
    %29 = vector.broadcast %21 : i32 to vector<8x8xi32>
    %30 = arith.addi %28, %29 : vector<8x8xi32>
    %31 = vector.broadcast %19 : vector<8x1xi32> to vector<8x8xi32>
    %32 = arith.cmpi eq, %31, %30 : vector<8x8xi32>
    %33 = arith.extui %32 : vector<8x8xi1> to vector<8x8xi32>
    %34 = arith.sitofp %33 : vector<8x8xi32> to vector<8x8xf32>
    %35 = arith.truncf %34 : vector<8x8xf32> to vector<8x8xbf16>
    %c0_15 = arith.constant 0 : index
    %c0_16 = arith.constant 0 : index
    %36 = vector.load %arg6[%c0_15, %c0_16] : memref<8x32xbf16, #tpu.memory_space<vmem>>, vector<8x32xbf16>
    %cst_17 = arith.constant dense<0.000000e+00> : vector<8x32xf32>
    %37 = tpu.matmul %35, %36, %cst_17 {dimension_numbers = #tpu.dot_dimension_numbers<[1], [0], [0], [1], [0, 0, 1, 1], [], []>} : vector<8x8xbf16>, vector<8x32xbf16>, vector<8x32xf32> -> vector<8x32xf32>
    %c0_18 = arith.constant 0 : index
    %c0_19 = arith.constant 0 : index
    %38 = vector.load %arg5[%c0_18, %c0_19] : memref<8x64xbf16, #tpu.memory_space<vmem>>, vector<8x64xbf16>
    %cst_20 = arith.constant dense<0.000000e+00> : vector<8x64xf32>
    %39 = tpu.matmul %27, %38, %cst_20 {dimension_numbers = #tpu.dot_dimension_numbers<[1], [0], [0], [1], [0, 0, 1, 1], [], []>} : vector<8x8xbf16>, vector<8x64xbf16>, vector<8x64xf32> -> vector<8x64xf32>
    %40 = vector.extract_strided_slice %39 {offsets = [0, 0], sizes = [8, 32], strides = [1, 1]} : vector<8x64xf32> to vector<8x32xf32>
    %41 = arith.addf %40, %18 : vector<8x32xf32>
    %42 = vector.extract_strided_slice %39 {offsets = [0, 32], sizes = [8, 32], strides = [1, 1]} : vector<8x64xf32> to vector<8x32xf32>
    %43 = arith.addf %42, %18 : vector<8x32xf32>
    %44 = arith.mulf %37, %41 : vector<8x32xf32>
    %cst_21 = arith.constant 5.000000e-01 : f32
    %45 = vector.broadcast %cst_21 : f32 to vector<8x32xf32>
    %46 = arith.mulf %44, %45 : vector<8x32xf32>
    %47 = arith.truncf %46 : vector<8x32xf32> to vector<8x32xbf16>
    %c0_22 = arith.constant 0 : index
    %c0_23 = arith.constant 0 : index
    %48 = vector.load %arg10[%c0_22, %c0_23] : memref<32x8xbf16, #tpu.memory_space<vmem>>, vector<32x8xbf16>
    %cst_24 = arith.constant dense<0.000000e+00> : vector<8x8xf32>
    %49 = tpu.matmul %47, %48, %cst_24 {dimension_numbers = #tpu.dot_dimension_numbers<[1], [0], [0], [1], [0, 0, 1, 1], [], []>} : vector<8x32xbf16>, vector<32x8xbf16>, vector<8x8xf32> -> vector<8x8xf32>
    %50 = vector.extract_strided_slice %49 {offsets = [0, 0], sizes = [8, 1], strides = [1, 1]} : vector<8x8xf32> to vector<8x1xf32>
    %cst_25 = arith.constant -1.2676506E+30 : f32
    %51 = vector.shape_cast %50 : vector<8x1xf32> to vector<8x1xf32>
    %52 = vector.broadcast %51 : vector<8x1xf32> to vector<8x8xf32>
    %53 = vector.broadcast %cst_25 : f32 to vector<8x8xf32>
    %54 = arith.select %32, %52, %53 : vector<8x8xi1>, vector<8x8xf32>
    %cst_26 = arith.constant dense<0xFF800000> : vector<8xf32>
    %55 = vector.multi_reduction <maximumf>, %54, %cst_26 [0] : vector<8x8xf32> to vector<8xf32>
    %56 = vector.shape_cast %55 : vector<8xf32> to vector<1x8xf32>
    %57 = vector.extract_strided_slice %49 {offsets = [0, 1], sizes = [8, 1], strides = [1, 1]} : vector<8x8xf32> to vector<8x1xf32>
    %cst_27 = arith.constant -1.2676506E+30 : f32
    %58 = vector.shape_cast %57 : vector<8x1xf32> to vector<8x1xf32>
    %59 = vector.broadcast %58 : vector<8x1xf32> to vector<8x8xf32>
    %60 = vector.broadcast %cst_27 : f32 to vector<8x8xf32>
    %61 = arith.select %32, %59, %60 : vector<8x8xi1>, vector<8x8xf32>
    %cst_28 = arith.constant dense<0xFF800000> : vector<8xf32>
    %62 = vector.multi_reduction <maximumf>, %61, %cst_28 [0] : vector<8x8xf32> to vector<8xf32>
    %63 = vector.shape_cast %62 : vector<8xf32> to vector<1x8xf32>
    %64 = vector.extract_strided_slice %49 {offsets = [0, 2], sizes = [8, 1], strides = [1, 1]} : vector<8x8xf32> to vector<8x1xf32>
    %cst_29 = arith.constant -1.2676506E+30 : f32
    %65 = vector.shape_cast %64 : vector<8x1xf32> to vector<8x1xf32>
    %66 = vector.broadcast %65 : vector<8x1xf32> to vector<8x8xf32>
    %67 = vector.broadcast %cst_29 : f32 to vector<8x8xf32>
    %68 = arith.select %32, %66, %67 : vector<8x8xi1>, vector<8x8xf32>
    %cst_30 = arith.constant dense<0xFF800000> : vector<8xf32>
    %69 = vector.multi_reduction <maximumf>, %68, %cst_30 [0] : vector<8x8xf32> to vector<8xf32>
    %70 = vector.shape_cast %69 : vector<8xf32> to vector<1x8xf32>
    %71 = vector.extract_strided_slice %49 {offsets = [0, 3], sizes = [8, 1], strides = [1, 1]} : vector<8x8xf32> to vector<8x1xf32>
    %cst_31 = arith.constant -1.2676506E+30 : f32
    %72 = vector.shape_cast %71 : vector<8x1xf32> to vector<8x1xf32>
    %73 = vector.broadcast %72 : vector<8x1xf32> to vector<8x8xf32>
    %74 = vector.broadcast %cst_31 : f32 to vector<8x8xf32>
    %75 = arith.select %32, %73, %74 : vector<8x8xi1>, vector<8x8xf32>
    %cst_32 = arith.constant dense<0xFF800000> : vector<8xf32>
    %76 = vector.multi_reduction <maximumf>, %75, %cst_32 [0] : vector<8x8xf32> to vector<8xf32>
    %77 = vector.shape_cast %76 : vector<8xf32> to vector<1x8xf32>
    %78 = vector.extract_strided_slice %49 {offsets = [0, 4], sizes = [8, 1], strides = [1, 1]} : vector<8x8xf32> to vector<8x1xf32>
    %cst_33 = arith.constant -1.2676506E+30 : f32
    %79 = vector.shape_cast %78 : vector<8x1xf32> to vector<8x1xf32>
    %80 = vector.broadcast %79 : vector<8x1xf32> to vector<8x8xf32>
    %81 = vector.broadcast %cst_33 : f32 to vector<8x8xf32>
    %82 = arith.select %32, %80, %81 : vector<8x8xi1>, vector<8x8xf32>
    %cst_34 = arith.constant dense<0xFF800000> : vector<8xf32>
    %83 = vector.multi_reduction <maximumf>, %82, %cst_34 [0] : vector<8x8xf32> to vector<8xf32>
    %84 = vector.shape_cast %83 : vector<8xf32> to vector<1x8xf32>
    %85 = vector.extract_strided_slice %49 {offsets = [0, 5], sizes = [8, 1], strides = [1, 1]} : vector<8x8xf32> to vector<8x1xf32>
    %cst_35 = arith.constant -1.2676506E+30 : f32
    %86 = vector.shape_cast %85 : vector<8x1xf32> to vector<8x1xf32>
    %87 = vector.broadcast %86 : vector<8x1xf32> to vector<8x8xf32>
    %88 = vector.broadcast %cst_35 : f32 to vector<8x8xf32>
    %89 = arith.select %32, %87, %88 : vector<8x8xi1>, vector<8x8xf32>
    %cst_36 = arith.constant dense<0xFF800000> : vector<8xf32>
    %90 = vector.multi_reduction <maximumf>, %89, %cst_36 [0] : vector<8x8xf32> to vector<8xf32>
    %91 = vector.shape_cast %90 : vector<8xf32> to vector<1x8xf32>
    %92 = vector.extract_strided_slice %49 {offsets = [0, 6], sizes = [8, 1], strides = [1, 1]} : vector<8x8xf32> to vector<8x1xf32>
    %cst_37 = arith.constant -1.2676506E+30 : f32
    %93 = vector.shape_cast %92 : vector<8x1xf32> to vector<8x1xf32>
    %94 = vector.broadcast %93 : vector<8x1xf32> to vector<8x8xf32>
    %95 = vector.broadcast %cst_37 : f32 to vector<8x8xf32>
    %96 = arith.select %32, %94, %95 : vector<8x8xi1>, vector<8x8xf32>
    %cst_38 = arith.constant dense<0xFF800000> : vector<8xf32>
    %97 = vector.multi_reduction <maximumf>, %96, %cst_38 [0] : vector<8x8xf32> to vector<8xf32>
    %98 = vector.shape_cast %97 : vector<8xf32> to vector<1x8xf32>
    %99 = vector.extract_strided_slice %49 {offsets = [0, 7], sizes = [8, 1], strides = [1, 1]} : vector<8x8xf32> to vector<8x1xf32>
    %cst_39 = arith.constant -1.2676506E+30 : f32
    %100 = vector.shape_cast %99 : vector<8x1xf32> to vector<8x1xf32>
    %101 = vector.broadcast %100 : vector<8x1xf32> to vector<8x8xf32>
    %102 = vector.broadcast %cst_39 : f32 to vector<8x8xf32>
    %103 = arith.select %32, %101, %102 : vector<8x8xi1>, vector<8x8xf32>
    %cst_40 = arith.constant dense<0xFF800000> : vector<8xf32>
    %104 = vector.multi_reduction <maximumf>, %103, %cst_40 [0] : vector<8x8xf32> to vector<8xf32>
    %105 = vector.shape_cast %104 : vector<8xf32> to vector<1x8xf32>
    %106 = tpu.concatenate %56, %63, %70, %77, %84, %91, %98, %105 in 0 : vector<1x8xf32>, vector<1x8xf32>, vector<1x8xf32>, vector<1x8xf32>, vector<1x8xf32>, vector<1x8xf32>, vector<1x8xf32>, vector<1x8xf32> -> vector<8x8xf32>
    %c0_41 = arith.constant 0 : index
    %c0_42 = arith.constant 0 : index
    %107 = vector.load %arg12[%c0_41, %c0_42] : memref<8x8xf32, #tpu.memory_space<vmem>>, vector<8x8xf32>
    %108 = arith.maximumf %107, %106 : vector<8x8xf32>
    %109 = arith.truncf %108 : vector<8x8xf32> to vector<8x8xbf16>
    %110 = arith.extf %109 : vector<8x8xbf16> to vector<8x8xf32>
    %111 = arith.subf %107, %110 : vector<8x8xf32>
    %112 = math.exp %111 : vector<8x8xf32>
    %c0_43 = arith.constant 0 : index
    %c0_44 = arith.constant 0 : index
    %113 = vector.load %arg12[%c0_43, %c0_44] : memref<8x8xf32, #tpu.memory_space<vmem>>, vector<8x8xf32>
    tpu.vector_store %arg12[%c0_43, %c0_44], %110 {strides = array<i32>} : memref<8x8xf32, #tpu.memory_space<vmem>>, vector<8x8xf32>,
    %114 = arith.truncf %110 : vector<8x8xf32> to vector<8x8xbf16>
    %cst_45 = arith.constant dense<0.000000e+00> : vector<8x8xf32>
    %115 = tpu.matmul %35, %114, %cst_45 {dimension_numbers = #tpu.dot_dimension_numbers<[1], [1], [0], [0], [0, 0, 1, 0], [], []>} : vector<8x8xbf16>, vector<8x8xbf16>, vector<8x8xf32> -> vector<8x8xf32>
    %116 = vector.broadcast %21 : i32 to vector<8x1xi32>
    %117 = arith.cmpi sge, %19, %116 : vector<8x1xi32>
    %c8_i32_46 = arith.constant 8 : i32
    %118 = arith.addi %21, %c8_i32_46 : i32
    %119 = vector.broadcast %118 : i32 to vector<8x1xi32>
    %120 = arith.cmpi slt, %19, %119 : vector<8x1xi32>
    %121 = arith.andi %117, %120 : vector<8x1xi1>
    %122 = arith.subf %49, %115 : vector<8x8xf32>
    %123 = math.exp %122 : vector<8x8xf32>
    %cst_47 = arith.constant 0.000000e+00 : f32
    %124 = vector.shape_cast %121 : vector<8x1xi1> to vector<8x1xi1>
    %125 = vector.broadcast %124 : vector<8x1xi1> to vector<8x8xi1>
    %126 = vector.broadcast %cst_47 : f32 to vector<8x8xf32>
    %127 = arith.select %125, %123, %126 : vector<8x8xi1>, vector<8x8xf32>
    %128 = vector.extract_strided_slice %127 {offsets = [0, 0], sizes = [8, 1], strides = [1, 1]} : vector<8x8xf32> to vector<8x1xf32>
    %129 = vector.shape_cast %128 : vector<8x1xf32> to vector<8x1xf32>
    %130 = vector.broadcast %129 : vector<8x1xf32> to vector<8x4xf32>
    %131 = vector.extract_strided_slice %127 {offsets = [0, 1], sizes = [8, 1], strides = [1, 1]} : vector<8x8xf32> to vector<8x1xf32>
    %132 = vector.shape_cast %131 : vector<8x1xf32> to vector<8x1xf32>
    %133 = vector.broadcast %132 : vector<8x1xf32> to vector<8x4xf32>
    %134 = vector.extract_strided_slice %127 {offsets = [0, 2], sizes = [8, 1], strides = [1, 1]} : vector<8x8xf32> to vector<8x1xf32>
    %135 = vector.shape_cast %134 : vector<8x1xf32> to vector<8x1xf32>
    %136 = vector.broadcast %135 : vector<8x1xf32> to vector<8x4xf32>
    %137 = vector.extract_strided_slice %127 {offsets = [0, 3], sizes = [8, 1], strides = [1, 1]} : vector<8x8xf32> to vector<8x1xf32>
    %138 = vector.shape_cast %137 : vector<8x1xf32> to vector<8x1xf32>
    %139 = vector.broadcast %138 : vector<8x1xf32> to vector<8x4xf32>
    %140 = vector.extract_strided_slice %127 {offsets = [0, 4], sizes = [8, 1], strides = [1, 1]} : vector<8x8xf32> to vector<8x1xf32>
    %141 = vector.shape_cast %140 : vector<8x1xf32> to vector<8x1xf32>
    %142 = vector.broadcast %141 : vector<8x1xf32> to vector<8x4xf32>
    %143 = vector.extract_strided_slice %127 {offsets = [0, 5], sizes = [8, 1], strides = [1, 1]} : vector<8x8xf32> to vector<8x1xf32>
    %144 = vector.shape_cast %143 : vector<8x1xf32> to vector<8x1xf32>
    %145 = vector.broadcast %144 : vector<8x1xf32> to vector<8x4xf32>
    %146 = vector.extract_strided_slice %127 {offsets = [0, 6], sizes = [8, 1], strides = [1, 1]} : vector<8x8xf32> to vector<8x1xf32>
    %147 = vector.shape_cast %146 : vector<8x1xf32> to vector<8x1xf32>
    %148 = vector.broadcast %147 : vector<8x1xf32> to vector<8x4xf32>
    %149 = vector.extract_strided_slice %127 {offsets = [0, 7], sizes = [8, 1], strides = [1, 1]} : vector<8x8xf32> to vector<8x1xf32>
    %150 = vector.shape_cast %149 : vector<8x1xf32> to vector<8x1xf32>
    %151 = vector.broadcast %150 : vector<8x1xf32> to vector<8x4xf32>
    %152 = tpu.concatenate %130, %133, %136, %139, %142, %145, %148, %151 in 1 : vector<8x4xf32>, vector<8x4xf32>, vector<8x4xf32>, vector<8x4xf32>, vector<8x4xf32>, vector<8x4xf32>, vector<8x4xf32>, vector<8x4xf32> -> vector<8x32xf32>
    %153 = arith.mulf %43, %152 : vector<8x32xf32>
    %154 = arith.truncf %153 : vector<8x32xf32> to vector<8x32xbf16>
    %155 = arith.truncf %127 : vector<8x8xf32> to vector<8x8xbf16>
    %156 = tpu.concatenate %154, %155 in 1 : vector<8x32xbf16>, vector<8x8xbf16> -> vector<8x40xbf16>
    %cst_48 = arith.constant dense<0.000000e+00> : vector<40x8xf32>
    %157 = tpu.matmul %156, %35, %cst_48 {dimension_numbers = #tpu.dot_dimension_numbers<[0], [0], [1], [1], [0, 1, 1, 1], [], []>} : vector<8x40xbf16>, vector<8x8xbf16>, vector<40x8xf32> -> vector<40x8xf32>
    %158 = vector.extract_strided_slice %157 {offsets = [0, 0], sizes = [32, 8], strides = [1, 1]} : vector<40x8xf32> to vector<32x8xf32>
    %159 = vector.extract_strided_slice %157 {offsets = [32, 0], sizes = [8, 8], strides = [1, 1]} : vector<40x8xf32> to vector<8x8xf32>
    %c0_49 = arith.constant 0 : index
    %c0_50 = arith.constant 0 : index
    %160 = vector.load %arg13[%c0_49, %c0_50] : memref<8x8xf32, #tpu.memory_space<vmem>>, vector<8x8xf32>
    %161 = arith.mulf %112, %160 : vector<8x8xf32>
    %162 = arith.addf %161, %159 : vector<8x8xf32>
    %c0_51 = arith.constant 0 : index
    %c0_52 = arith.constant 0 : index
    %163 = vector.load %arg13[%c0_51, %c0_52] : memref<8x8xf32, #tpu.memory_space<vmem>>, vector<8x8xf32>
    tpu.vector_store %arg13[%c0_51, %c0_52], %162 {strides = array<i32>} : memref<8x8xf32, #tpu.memory_space<vmem>>, vector<8x8xf32>,
    %164 = vector.extract_strided_slice %112 {offsets = [0, 0], sizes = [1, 8], strides = [1, 1]} : vector<8x8xf32> to vector<1x8xf32>
    %165 = vector.shape_cast %164 : vector<1x8xf32> to vector<1x8xf32>
    %166 = vector.broadcast %165 : vector<1x8xf32> to vector<4x8xf32>
    %167 = vector.extract_strided_slice %112 {offsets = [1, 0], sizes = [1, 8], strides = [1, 1]} : vector<8x8xf32> to vector<1x8xf32>
    %168 = vector.shape_cast %167 : vector<1x8xf32> to vector<1x8xf32>
    %169 = vector.broadcast %168 : vector<1x8xf32> to vector<4x8xf32>
    %170 = vector.extract_strided_slice %112 {offsets = [2, 0], sizes = [1, 8], strides = [1, 1]} : vector<8x8xf32> to vector<1x8xf32>
    %171 = vector.shape_cast %170 : vector<1x8xf32> to vector<1x8xf32>
    %172 = vector.broadcast %171 : vector<1x8xf32> to vector<4x8xf32>
    %173 = vector.extract_strided_slice %112 {offsets = [3, 0], sizes = [1, 8], strides = [1, 1]} : vector<8x8xf32> to vector<1x8xf32>
    %174 = vector.shape_cast %173 : vector<1x8xf32> to vector<1x8xf32>
    %175 = vector.broadcast %174 : vector<1x8xf32> to vector<4x8xf32>
    %176 = vector.extract_strided_slice %112 {offsets = [4, 0], sizes = [1, 8], strides = [1, 1]} : vector<8x8xf32> to vector<1x8xf32>
    %177 = vector.shape_cast %176 : vector<1x8xf32> to vector<1x8xf32>
    %178 = vector.broadcast %177 : vector<1x8xf32> to vector<4x8xf32>
    %179 = vector.extract_strided_slice %112 {offsets = [5, 0], sizes = [1, 8], strides = [1, 1]} : vector<8x8xf32> to vector<1x8xf32>
    %180 = vector.shape_cast %179 : vector<1x8xf32> to vector<1x8xf32>
    %181 = vector.broadcast %180 : vector<1x8xf32> to vector<4x8xf32>
    %182 = vector.extract_strided_slice %112 {offsets = [6, 0], sizes = [1, 8], strides = [1, 1]} : vector<8x8xf32> to vector<1x8xf32>
    %183 = vector.shape_cast %182 : vector<1x8xf32> to vector<1x8xf32>
    %184 = vector.broadcast %183 : vector<1x8xf32> to vector<4x8xf32>
    %185 = vector.extract_strided_slice %112 {offsets = [7, 0], sizes = [1, 8], strides = [1, 1]} : vector<8x8xf32> to vector<1x8xf32>
    %186 = vector.shape_cast %185 : vector<1x8xf32> to vector<1x8xf32>
    %187 = vector.broadcast %186 : vector<1x8xf32> to vector<4x8xf32>
    %188 = tpu.concatenate %166, %169, %172, %175, %178, %181, %184, %187 in 0 : vector<4x8xf32>, vector<4x8xf32>, vector<4x8xf32>, vector<4x8xf32>, vector<4x8xf32>, vector<4x8xf32>, vector<4x8xf32>, vector<4x8xf32> -> vector<32x8xf32>
    %c0_53 = arith.constant 0 : index
    %c0_54 = arith.constant 0 : index
    %189 = vector.load %arg11[%c0_53, %c0_54] : memref<32x8xf32, #tpu.memory_space<vmem>>, vector<32x8xf32>
    %190 = arith.mulf %188, %189 : vector<32x8xf32>
    %191 = arith.addf %190, %158 : vector<32x8xf32>
    %c0_55 = arith.constant 0 : index
    %c0_56 = arith.constant 0 : index
    %192 = vector.load %arg11[%c0_55, %c0_56] : memref<32x8xf32, #tpu.memory_space<vmem>>, vector<32x8xf32>
    tpu.vector_store %arg11[%c0_55, %c0_56], %191 {strides = array<i32>} : memref<32x8xf32, #tpu.memory_space<vmem>>, vector<32x8xf32>,
    %c1_i32 = arith.constant 1 : i32
    %193 = arith.cmpi eq, %arg1, %c1_i32 : i32
    %194 = arith.extui %193 : i1 to i32
    %c0_i32_57 = arith.constant 0 : i32
    %195 = arith.cmpi ne, %194, %c0_i32_57 : i32
    scf.if %195 {
      %c0_58 = arith.constant 0 : index
      %c0_59 = arith.constant 0 : index
      %196 = vector.load %arg13[%c0_58, %c0_59] : memref<8x8xf32, #tpu.memory_space<vmem>>, vector<8x8xf32>
      %cst_60 = arith.constant 0.000000e+00 : f32
      %197 = vector.broadcast %cst_60 : f32 to vector<8x8xf32>
      %198 = arith.cmpf ogt, %196, %197 : vector<8x8xf32>
      %cst_61 = arith.constant 1.000000e-30 : f32
      %199 = vector.broadcast %cst_61 : f32 to vector<8x8xf32>
      %200 = arith.maximumf %196, %199 : vector<8x8xf32>
      %201 = tpu.reciprocal %200 {approx = true} : vector<8x8xf32> -> vector<8x8xf32>
      %cst_62 = arith.constant 0.000000e+00 : f32
      %202 = vector.broadcast %cst_62 : f32 to vector<8x8xf32>
      %203 = arith.select %198, %201, %202 : vector<8x8xi1>, vector<8x8xf32>
      %c0_63 = arith.constant 0 : index
      %c0_64 = arith.constant 0 : index
      %204 = vector.load %arg11[%c0_63, %c0_64] : memref<32x8xf32, #tpu.memory_space<vmem>>, vector<32x8xf32>
      %205 = vector.extract_strided_slice %203 {offsets = [0, 0], sizes = [1, 8], strides = [1, 1]} : vector<8x8xf32> to vector<1x8xf32>
      %206 = vector.shape_cast %205 : vector<1x8xf32> to vector<1x8xf32>
      %207 = vector.broadcast %206 : vector<1x8xf32> to vector<4x8xf32>
      %208 = vector.extract_strided_slice %203 {offsets = [1, 0], sizes = [1, 8], strides = [1, 1]} : vector<8x8xf32> to vector<1x8xf32>
      %209 = vector.shape_cast %208 : vector<1x8xf32> to vector<1x8xf32>
      %210 = vector.broadcast %209 : vector<1x8xf32> to vector<4x8xf32>
      %211 = vector.extract_strided_slice %203 {offsets = [2, 0], sizes = [1, 8], strides = [1, 1]} : vector<8x8xf32> to vector<1x8xf32>
      %212 = vector.shape_cast %211 : vector<1x8xf32> to vector<1x8xf32>
      %213 = vector.broadcast %212 : vector<1x8xf32> to vector<4x8xf32>
      %214 = vector.extract_strided_slice %203 {offsets = [3, 0], sizes = [1, 8], strides = [1, 1]} : vector<8x8xf32> to vector<1x8xf32>
      %215 = vector.shape_cast %214 : vector<1x8xf32> to vector<1x8xf32>
      %216 = vector.broadcast %215 : vector<1x8xf32> to vector<4x8xf32>
      %217 = vector.extract_strided_slice %203 {offsets = [4, 0], sizes = [1, 8], strides = [1, 1]} : vector<8x8xf32> to vector<1x8xf32>
      %218 = vector.shape_cast %217 : vector<1x8xf32> to vector<1x8xf32>
      %219 = vector.broadcast %218 : vector<1x8xf32> to vector<4x8xf32>
      %220 = vector.extract_strided_slice %203 {offsets = [5, 0], sizes = [1, 8], strides = [1, 1]} : vector<8x8xf32> to vector<1x8xf32>
      %221 = vector.shape_cast %220 : vector<1x8xf32> to vector<1x8xf32>
      %222 = vector.broadcast %221 : vector<1x8xf32> to vector<4x8xf32>
      %223 = vector.extract_strided_slice %203 {offsets = [6, 0], sizes = [1, 8], strides = [1, 1]} : vector<8x8xf32> to vector<1x8xf32>
      %224 = vector.shape_cast %223 : vector<1x8xf32> to vector<1x8xf32>
      %225 = vector.broadcast %224 : vector<1x8xf32> to vector<4x8xf32>
      %226 = vector.extract_strided_slice %203 {offsets = [7, 0], sizes = [1, 8], strides = [1, 1]} : vector<8x8xf32> to vector<1x8xf32>
      %227 = vector.shape_cast %226 : vector<1x8xf32> to vector<1x8xf32>
      %228 = vector.broadcast %227 : vector<1x8xf32> to vector<4x8xf32>
      %229 = tpu.concatenate %207, %210, %213, %216, %219, %222, %225, %228 in 0 : vector<4x8xf32>, vector<4x8xf32>, vector<4x8xf32>, vector<4x8xf32>, vector<4x8xf32>, vector<4x8xf32>, vector<4x8xf32>, vector<4x8xf32> -> vector<32x8xf32>
      %230 = arith.mulf %204, %229 : vector<32x8xf32>
      %c0_65 = arith.constant 0 : index
      %c0_66 = arith.constant 0 : index
      %231 = vector.load %arg11[%c0_65, %c0_66] : memref<32x8xf32, #tpu.memory_space<vmem>>, vector<32x8xf32>
      tpu.vector_store %arg11[%c0_65, %c0_66], %230 {strides = array<i32>} : memref<32x8xf32, #tpu.memory_space<vmem>>, vector<32x8xf32>,
    } else {
    }
    return
  }
  func.func @transform_0(%arg0: i32, %arg1: i32) -> (i32, i32) {
    %c0_i32 = arith.constant 0 : i32
    %c0_i32_0 = arith.constant 0 : i32
    return %arg1, %c0_i32 : i32, i32
  }
  func.func @transform_1(%arg0: i32, %arg1: i32) -> (i32, i32) {
    %c0_i32 = arith.constant 0 : i32
    %c0_i32_0 = arith.constant 0 : i32
    return %arg1, %c0_i32 : i32, i32
  }
  func.func @transform_2(%arg0: i32, %arg1: i32) -> (i32, i32) {
    %c0_i32 = arith.constant 0 : i32
    %c0_i32_0 = arith.constant 0 : i32
    return %arg1, %c0_i32 : i32, i32
  }
  func.func @transform_3(%arg0: i32, %arg1: i32) -> (i32, i32) {
    %c0_i32 = arith.constant 0 : i32
    %c0_i32_0 = arith.constant 0 : i32
    %c0_i32_1 = arith.constant 0 : i32
    return %c0_i32, %c0_i32_0 : i32, i32
  }
  func.func @transform_4(%arg0: i32, %arg1: i32) -> (i32, i32) {
    %c0_i32 = arith.constant 0 : i32
    %c0_i32_0 = arith.constant 0 : i32
    return %arg0, %c0_i32 : i32, i32
  }
  func.func @transform_5(%arg0: i32, %arg1: i32) -> (i32, i32) {
    %c0_i32 = arith.constant 0 : i32
    %c0_i32_0 = arith.constant 0 : i32
    %c0_i32_1 = arith.constant 0 : i32
    return %c0_i32, %c0_i32_0 : i32, i32
  }
  func.func @transform_6(%arg0: i32, %arg1: i32) -> (i32, i32) {
    %c0_i32 = arith.constant 0 : i32
    %c0_i32_0 = arith.constant 0 : i32
    %c0_i32_1 = arith.constant 0 : i32
    return %c0_i32, %c0_i32_0 : i32, i32
  }
  func.func @transform_7(%arg0: i32, %arg1: i32) -> (i32, i32) {
    %c0_i32 = arith.constant 0 : i32
    %c0_i32_0 = arith.constant 0 : i32
    %c0_i32_1 = arith.constant 0 : i32
    return %c0_i32, %c0_i32_0 : i32, i32
  }
  func.func @transform_8(%arg0: i32, %arg1: i32) -> (i32, i32) {
    %c0_i32 = arith.constant 0 : i32
    %c0_i32_0 = arith.constant 0 : i32
    %c0_i32_1 = arith.constant 0 : i32
    return %c0_i32, %c0_i32_0 : i32, i32
  }
  func.func @transform_9(%arg0: i32, %arg1: i32) -> (i32, i32) {
    %c0_i32 = arith.constant 0 : i32
    %c0_i32_0 = arith.constant 0 : i32
    return %c0_i32, %arg0 : i32, i32
  }
}

</mosaic_0001>

<llo_original>
// kernel: tpu_custom_call.1
$region0: #{tpu_custom_call.1}
  #allocation0 [shape = 'u32[]', space=smem, size = 0x4, offset = 0x4, fixed_abs, tag = 'smem constant byte address 0x4 - core index']
  #allocation1 [shape = 'u32[72,128]{1,0:T(1,128)}', space=vmem, size = 0x9000, scoped, tag = 'internal scratch']
  #allocation2 [shape = 'f32[8,8]{1,0:T(8,128)}', space=vmem, size = 0x1000, scoped, tag = 'scratch operand']
  #allocation3 [shape = 'f32[8,8]{1,0:T(8,128)}', space=vmem, size = 0x1000, scoped, tag = 'scratch operand']
  %s0 = inlined_call_operand.vmem [shape: s32[16,2], index: 0, kind: input, shape index: {}]
  %s1 = inlined_call_operand.vmem [shape: f32[16,1], index: 1, kind: input, shape index: {}]
  %s2 = inlined_call_operand.vmem [shape: bf16[16,16], index: 2, kind: input, shape index: {}]
  %s3 = inlined_call_operand.vmem [shape: bf16[8,64], index: 3, kind: input, shape index: {}]
  %s4 = inlined_call_operand.vmem [shape: bf16[8,32], index: 4, kind: input, shape index: {}]
  %s5 = inlined_call_operand.vmem [shape: bf16[24,32], index: 5, kind: input, shape index: {}]
  %s6 = inlined_call_operand.vmem [shape: f32[1,8], index: 6, kind: input, shape index: {}]
  %s7 = inlined_call_operand.vmem [shape: f32[1,8], index: 7, kind: input, shape index: {}]
  %s8 = inlined_call_operand.vmem [shape: bf16[32,8], index: 8, kind: input, shape index: {}]
  %s9 = inlined_call_operand.vmem [shape: f32[32,8], index: 9, kind: output, shape index: {}]
  %s10 = sld [smem:[#allocation0]]
  $region77: #{tpu_custom_call.1} parent=0
    _
  %s12 = ssub.s32 1, %s10
  %s13 = scalar_select 0, %s12, %s10
  loop: start=0, step=1, limit=4
  $region2: #{tpu_custom_call.1} parent=0 // loop_pre_header
    _
  $region3: #{tpu_custom_call.1} parent=0 // loop_header
    %s15 = sphi 0, %s19
    %p16 = scmp.ge.s32.totalorder %s15, 4
    %s22 = sphi 0, %s34
    %s23 = sphi 0, %s30
    %s24 = sphi 0, %s22
    %s25 = sphi 0, %s23
    %s26 = sphi 0, %s24
    %s27 = sphi 0, %s25
    %s37 = sphi 0, %s39
    %s40 = sphi 0, %s37
    %s41 = sphi 0, %s40
    %s57 = sphi 0, %s41
    %s63 = sphi 0, %s65
    %s66 = sphi 0, %s63
    %s67 = sphi 0, %s66
    %s83 = sphi 0, %s67
    %s89 = sphi 0, %s91
    %s92 = sphi 0, %s89
    %s93 = sphi 0, %s92
    %s109 = sphi 0, %s93
    %s113 = sphi 0, %s113
    %s115 = sphi 0, %s113
    %s116 = sphi 0, %s115
    %s130 = sphi 0, %s116
    %s136 = sphi 0, %s138
    %s139 = sphi 0, %s136
    %s140 = sphi 0, %s139
    %s156 = sphi 0, %s140
    %s160 = sphi 0, %s160
    %s162 = sphi 0, %s160
    %s163 = sphi 0, %s162
    %s177 = sphi 0, %s163
    %s181 = sphi 0, %s181
    %s183 = sphi 0, %s181
    %s184 = sphi 0, %s183
    %s198 = sphi 0, %s184
    %s202 = sphi 0, %s202
    %s204 = sphi 0, %s202
    %s205 = sphi 0, %s204
    %s219 = sphi 0, %s205
    %s223 = sphi 0, %s223
    %s225 = sphi 0, %s223
    %s226 = sphi 0, %s225
    %s240 = sphi 0, %s226
    %s246 = sphi 0, %s248
    %s249 = sphi 0, %s246
    %s250 = sphi 0, %s249
    %s266 = sphi 0, %s250
  $region4: #{tpu_custom_call.1} parent=0 // loop_header_branch
    %18 = sbr.rel (%p16) target = $region8
  $region5: #{tpu_custom_call.1} parent=0 // loop_body
    %s20 = ssub.s32 %s15, 1
    %s21 = ssub.s32 %s15, 2
    %s28 = sadd.s32 1, %s23
    %p29 = scmp.ge.s32.totalorder %s28, 2
    %s30 = scalar_select %p29, 0, %s28
    %s31 = sadd.s32 1, %s22
    %s32 = scalar_select %p29, %s31, %s22
    %p33 = scmp.ge.s32.totalorder %s32, 1
    %s34 = scalar_select %p33, 0, %s32
    %s35 = ssub.s32 %s23, %s30
    %p36 = scmp.eq.s32.totalorder %s35, 0
    %s38 = sadd.s32 %s37, 1
    %s39 = scalar_select %p36, %s37, %s38
    %p42 = pneg %p36
    %p43 = scmp.eq.s32.totalorder %s15, 1
    %p44 = por %p42, %p43
    %p45 = scmp.ne.s32.totalorder %s37, %s40
    %p46 = scmp.eq.s32.totalorder %s15, 0
    %p47 = por %p45, %p46
    %p48 = scmp.ne.s32.totalorder %s37, %s40
    %p49 = scmp.eq.s32.totalorder %s20, 1
    %p50 = por %p48, %p49
    %p51 = scmp.ne.s32.totalorder %s40, %s41
    %p52 = scmp.eq.s32.totalorder %s20, 0
    %p53 = por %p51, %p52
    %p54 = scmp.ne.s32.totalorder %s40, %s41
    %p55 = scmp.eq.s32.totalorder %s21, 1
    %p56 = por %p54, %p55
    %p58 = scmp.ne.s32.totalorder %s41, %s57
    %p59 = scmp.eq.s32.totalorder %s21, 0
    %p60 = por %p58, %p59
    %s61 = ssub.s32 %s23, %s30
    %p62 = scmp.eq.s32.totalorder %s61, 0
    %s64 = sadd.s32 %s63, 1
    %s65 = scalar_select %p62, %s63, %s64
    %p68 = pneg %p62
    %p69 = scmp.eq.s32.totalorder %s15, 1
    %p70 = por %p68, %p69
    %p71 = scmp.ne.s32.totalorder %s63, %s66
    %p72 = scmp.eq.s32.totalorder %s15, 0
    %p73 = por %p71, %p72
    %p74 = scmp.ne.s32.totalorder %s63, %s66
    %p75 = scmp.eq.s32.totalorder %s20, 1
    %p76 = por %p74, %p75
    %p77 = scmp.ne.s32.totalorder %s66, %s67
    %p78 = scmp.eq.s32.totalorder %s20, 0
    %p79 = por %p77, %p78
    %p80 = scmp.ne.s32.totalorder %s66, %s67
    %p81 = scmp.eq.s32.totalorder %s21, 1
    %p82 = por %p80, %p81
    %p84 = scmp.ne.s32.totalorder %s67, %s83
    %p85 = scmp.eq.s32.totalorder %s21, 0
    %p86 = por %p84, %p85
    %s87 = ssub.s32 %s23, %s30
    %p88 = scmp.eq.s32.totalorder %s87, 0
    %s90 = sadd.s32 %s89, 1
    %s91 = scalar_select %p88, %s89, %s90
    %p94 = pneg %p88
    %p95 = scmp.eq.s32.totalorder %s15, 1
    %p96 = por %p94, %p95
    %p97 = scmp.ne.s32.totalorder %s89, %s92
    %p98 = scmp.eq.s32.totalorder %s15, 0
    %p99 = por %p97, %p98
    %p100 = scmp.ne.s32.totalorder %s89, %s92
    %p101 = scmp.eq.s32.totalorder %s20, 1
    %p102 = por %p100, %p101
    %p103 = scmp.ne.s32.totalorder %s92, %s93
    %p104 = scmp.eq.s32.totalorder %s20, 0
    %p105 = por %p103, %p104
    %p106 = scmp.ne.s32.totalorder %s92, %s93
    %p107 = scmp.eq.s32.totalorder %s21, 1
    %p108 = por %p106, %p107
    %p110 = scmp.ne.s32.totalorder %s93, %s109
    %p111 = scmp.eq.s32.totalorder %s21, 0
    %p112 = por %p110, %p111
    %s114 = sadd.s32 %s113, 1
    %p117 = scmp.eq.s32.totalorder %s15, 1
    %p118 = scmp.ne.s32.totalorder %s113, %s115
    %p119 = scmp.eq.s32.totalorder %s15, 0
    %p120 = por %p118, %p119
    %p121 = scmp.ne.s32.totalorder %s113, %s115
    %p122 = scmp.eq.s32.totalorder %s20, 1
    %p123 = por %p121, %p122
    %p124 = scmp.ne.s32.totalorder %s115, %s116
    %p125 = scmp.eq.s32.totalorder %s20, 0
    %p126 = por %p124, %p125
    %p127 = scmp.ne.s32.totalorder %s115, %s116
    %p128 = scmp.eq.s32.totalorder %s21, 1
    %p129 = por %p127, %p128
    %p131 = scmp.ne.s32.totalorder %s116, %s130
    %p132 = scmp.eq.s32.totalorder %s21, 0
    %p133 = por %p131, %p132
    %s134 = ssub.s32 %s22, %s34
    %p135 = scmp.eq.s32.totalorder %s134, 0
    %s137 = sadd.s32 %s136, 1
    %s138 = scalar_select %p135, %s136, %s137
    %p141 = pneg %p135
    %p142 = scmp.eq.s32.totalorder %s15, 1
    %p143 = por %p141, %p142
    %p144 = scmp.ne.s32.totalorder %s136, %s139
    %p145 = scmp.eq.s32.totalorder %s15, 0
    %p146 = por %p144, %p145
    %p147 = scmp.ne.s32.totalorder %s136, %s139
    %p148 = scmp.eq.s32.totalorder %s20, 1
    %p149 = por %p147, %p148
    %p150 = scmp.ne.s32.totalorder %s139, %s140
    %p151 = scmp.eq.s32.totalorder %s20, 0
    %p152 = por %p150, %p151
    %p153 = scmp.ne.s32.totalorder %s139, %s140
    %p154 = scmp.eq.s32.totalorder %s21, 1
    %p155 = por %p153, %p154
    %p157 = scmp.ne.s32.totalorder %s140, %s156
    %p158 = scmp.eq.s32.totalorder %s21, 0
    %p159 = por %p157, %p158
    %s161 = sadd.s32 %s160, 1
    %p164 = scmp.eq.s32.totalorder %s15, 1
    %p165 = scmp.ne.s32.totalorder %s160, %s162
    %p166 = scmp.eq.s32.totalorder %s15, 0
    %p167 = por %p165, %p166
    %p168 = scmp.ne.s32.totalorder %s160, %s162
    %p169 = scmp.eq.s32.totalorder %s20, 1
    %p170 = por %p168, %p169
    %p171 = scmp.ne.s32.totalorder %s162, %s163
    %p172 = scmp.eq.s32.totalorder %s20, 0
    %p173 = por %p171, %p172
    %p174 = scmp.ne.s32.totalorder %s162, %s163
    %p175 = scmp.eq.s32.totalorder %s21, 1
    %p176 = por %p174, %p175
    %p178 = scmp.ne.s32.totalorder %s163, %s177
    %p179 = scmp.eq.s32.totalorder %s21, 0
    %p180 = por %p178, %p179
    %s182 = sadd.s32 %s181, 1
    %p185 = scmp.eq.s32.totalorder %s15, 1
    %p186 = scmp.ne.s32.totalorder %s181, %s183
    %p187 = scmp.eq.s32.totalorder %s15, 0
    %p188 = por %p186, %p187
    %p189 = scmp.ne.s32.totalorder %s181, %s183
    %p190 = scmp.eq.s32.totalorder %s20, 1
    %p191 = por %p189, %p190
    %p192 = scmp.ne.s32.totalorder %s183, %s184
    %p193 = scmp.eq.s32.totalorder %s20, 0
    %p194 = por %p192, %p193
    %p195 = scmp.ne.s32.totalorder %s183, %s184
    %p196 = scmp.eq.s32.totalorder %s21, 1
    %p197 = por %p195, %p196
    %p199 = scmp.ne.s32.totalorder %s184, %s198
    %p200 = scmp.eq.s32.totalorder %s21, 0
    %p201 = por %p199, %p200
    %s203 = sadd.s32 %s202, 1
    %p206 = scmp.eq.s32.totalorder %s15, 1
    %p207 = scmp.ne.s32.totalorder %s202, %s204
    %p208 = scmp.eq.s32.totalorder %s15, 0
    %p209 = por %p207, %p208
    %p210 = scmp.ne.s32.totalorder %s202, %s204
    %p211 = scmp.eq.s32.totalorder %s20, 1
    %p212 = por %p210, %p211
    %p213 = scmp.ne.s32.totalorder %s204, %s205
    %p214 = scmp.eq.s32.totalorder %s20, 0
    %p215 = por %p213, %p214
    %p216 = scmp.ne.s32.totalorder %s204, %s205
    %p217 = scmp.eq.s32.totalorder %s21, 1
    %p218 = por %p216, %p217
    %p220 = scmp.ne.s32.totalorder %s205, %s219
    %p221 = scmp.eq.s32.totalorder %s21, 0
    %p222 = por %p220, %p221
    %s224 = sadd.s32 %s223, 1
    %p227 = scmp.eq.s32.totalorder %s15, 1
    %p228 = scmp.ne.s32.totalorder %s223, %s225
    %p229 = scmp.eq.s32.totalorder %s15, 0
    %p230 = por %p228, %p229
    %p231 = scmp.ne.s32.totalorder %s223, %s225
    %p232 = scmp.eq.s32.totalorder %s20, 1
    %p233 = por %p231, %p232
    %p234 = scmp.ne.s32.totalorder %s225, %s226
    %p235 = scmp.eq.s32.totalorder %s20, 0
    %p236 = por %p234, %p235
    %p237 = scmp.ne.s32.totalorder %s225, %s226
    %p238 = scmp.eq.s32.totalorder %s21, 1
    %p239 = por %p237, %p238
    %p241 = scmp.ne.s32.totalorder %s226, %s240
    %p242 = scmp.eq.s32.totalorder %s21, 0
    %p243 = por %p241, %p242
    %s244 = ssub.s32 %s22, %s34
    %p245 = scmp.eq.s32.totalorder %s244, 0
    %s247 = sadd.s32 %s246, 1
    %s248 = scalar_select %p245, %s246, %s247
    %p251 = pneg %p245
    %p252 = scmp.eq.s32.totalorder %s15, 1
    %p253 = por %p251, %p252
    %p254 = scmp.ne.s32.totalorder %s246, %s249
    %p255 = scmp.eq.s32.totalorder %s15, 0
    %p256 = por %p254, %p255
    %p257 = scmp.ne.s32.totalorder %s246, %s249
    %p258 = scmp.eq.s32.totalorder %s20, 1
    %p259 = por %p257, %p258
    %p260 = scmp.ne.s32.totalorder %s249, %s250
    %p261 = scmp.eq.s32.totalorder %s20, 0
    %p262 = por %p260, %p261
    %p263 = scmp.ne.s32.totalorder %s249, %s250
    %p264 = scmp.eq.s32.totalorder %s21, 1
    %p265 = por %p263, %p264
    %p267 = scmp.ne.s32.totalorder %s250, %s266
    %p268 = scmp.eq.s32.totalorder %s21, 0
    %p269 = por %p267, %p268
    %p270 = scmp.le.s32.totalorder 1, %s15
    %p271 = scmp.lt.s32.totalorder %s15, 3
    %p272 = pnand %p270, %p271
    %p273 = pneg %p272
    // Predicated region
    $region9: #{tpu_custom_call.1} parent=5 // pred_check
      _
    $region10: #{tpu_custom_call.1} parent=5 // pred_check_branch
      %275 = sbr.rel (%p272) target = $region12
    $region11: #{tpu_custom_call.1} parent=5 // pred_region
      %s276 = ssub.s32 %s15, 1
      // Predicated region
      $region13: #{tpu_custom_call.1} parent=11 // pred_check
        %p277 = pneg %p126
      $region14: #{tpu_custom_call.1} parent=11 // pred_check_branch
        %279 = sbr.rel (%p277) target = $region16
      $region15: #{tpu_custom_call.1} parent=11 // pred_region
        _
      $region16: #{tpu_custom_call.1} parent=11 // pred_fallthru
        _
      // Predicated region
      $region17: #{tpu_custom_call.1} parent=11 // pred_check
        %p280 = pneg %p152
      $region18: #{tpu_custom_call.1} parent=11 // pred_check_branch
        %282 = sbr.rel (%p280) target = $region20
      $region19: #{tpu_custom_call.1} parent=11 // pred_region
        %p283 = scmp.lt.s32.totalorder %s24, 0
        %s284 = scalar_select %p283, %s24, 0
        %s285 = smul.addr %s284, 4
        %s286 = scalar_lea.vmem %s4, %s285
      $region20: #{tpu_custom_call.1} parent=11 // pred_fallthru
        _
      // Predicated region
      $region21: #{tpu_custom_call.1} parent=11 // pred_check
        %p287 = pneg %p173
      $region22: #{tpu_custom_call.1} parent=11 // pred_check_branch
        %289 = sbr.rel (%p287) target = $region24
      $region23: #{tpu_custom_call.1} parent=11 // pred_region
        _
      $region24: #{tpu_custom_call.1} parent=11 // pred_fallthru
        _
      // Predicated region
      $region25: #{tpu_custom_call.1} parent=11 // pred_check
        %p290 = pneg %p194
      $region26: #{tpu_custom_call.1} parent=11 // pred_check_branch
        %292 = sbr.rel (%p290) target = $region28
      $region27: #{tpu_custom_call.1} parent=11 // pred_region
        _
      $region28: #{tpu_custom_call.1} parent=11 // pred_fallthru
        _
      // Predicated region
      $region29: #{tpu_custom_call.1} parent=11 // pred_check
        %p293 = pneg %p215
      $region30: #{tpu_custom_call.1} parent=11 // pred_check_branch
        %295 = sbr.rel (%p293) target = $region32
      $region31: #{tpu_custom_call.1} parent=11 // pred_region
        _
      $region32: #{tpu_custom_call.1} parent=11 // pred_fallthru
        _
      // Predicated region
      $region33: #{tpu_custom_call.1} parent=11 // pred_check
        %p296 = pneg %p236
      $region34: #{tpu_custom_call.1} parent=11 // pred_check_branch
        %298 = sbr.rel (%p296) target = $region36
      $region35: #{tpu_custom_call.1} parent=11 // pred_region
        _
      $region36: #{tpu_custom_call.1} parent=11 // pred_fallthru
        _
    $region12: #{tpu_custom_call.1} parent=5 // pred_fallthru
      _
    %p299 = scmp.lt.s32.totalorder %s15, 2
    // Predicated region
    $region37: #{tpu_custom_call.1} parent=5 // pred_check
      %p300 = pneg %p299
    $region38: #{tpu_custom_call.1} parent=5 // pred_check_branch
      %302 = sbr.rel (%p300) target = $region40
    $region39: #{tpu_custom_call.1} parent=5 // pred_region
      // Predicated region
      $region41: #{tpu_custom_call.1} parent=39 // pred_check
        %p303 = pneg %p47
      $region42: #{tpu_custom_call.1} parent=39 // pred_check_branch
        %305 = sbr.rel (%p303) target = $region44
      $region43: #{tpu_custom_call.1} parent=39 // pred_region
        %p306 = scmp.lt.s32.totalorder %s23, 1
        %s307 = scalar_select %p306, %s23, 1
        %s308 = smul.addr %s307, 8
        %s309 = scalar_lea.vmem %s0, %s308
      $region44: #{tpu_custom_call.1} parent=39 // pred_fallthru
        _
      // Predicated region
      $region45: #{tpu_custom_call.1} parent=39 // pred_check
        %p310 = pneg %p73
      $region46: #{tpu_custom_call.1} parent=39 // pred_check_branch
        %312 = sbr.rel (%p310) target = $region48
      $region47: #{tpu_custom_call.1} parent=39 // pred_region
        %p313 = scmp.lt.s32.totalorder %s23, 1
        %s314 = scalar_select %p313, %s23, 1
        %s315 = smul.addr %s314, 8
        %s316 = scalar_lea.vmem %s1, %s315
      $region48: #{tpu_custom_call.1} parent=39 // pred_fallthru
        _
      // Predicated region
      $region49: #{tpu_custom_call.1} parent=39 // pred_check
        %p317 = pneg %p99
      $region50: #{tpu_custom_call.1} parent=39 // pred_check_branch
        %319 = sbr.rel (%p317) target = $region52
      $region51: #{tpu_custom_call.1} parent=39 // pred_region
        %p320 = scmp.lt.s32.totalorder %s23, 1
        %s321 = scalar_select %p320, %s23, 1
        %s322 = smul.addr %s321, 4
        %s323 = scalar_lea.vmem %s2, %s322
      $region52: #{tpu_custom_call.1} parent=39 // pred_fallthru
        _
    $region40: #{tpu_custom_call.1} parent=5 // pred_fallthru
      _
    %p324 = scmp.le.s32.totalorder 1, %s15
    %p325 = scmp.lt.s32.totalorder %s15, 3
    %p326 = pnand %p324, %p325
    %p327 = pneg %p326
    // Predicated region
    $region53: #{tpu_custom_call.1} parent=5 // pred_check
      _
    $region54: #{tpu_custom_call.1} parent=5 // pred_check_branch
      %329 = sbr.rel (%p326) target = $region56
    $region55: #{tpu_custom_call.1} parent=5 // pred_region
      %s330 = ssub.s32 %s15, 1
      %p331 = scmp.lt.s32.totalorder %s25, 1
      %s332 = scalar_select %p331, %s25, 1
      %s333 = smul.addr %s332, 8
      %s334 = scalar_lea.vmem %s0, %s333
      %p335 = pneg %p53
      %p336 = pneg %p50
      %p337 = scmp.lt.s32.totalorder %s25, 1
      %s338 = scalar_select %p337, %s25, 1
      %s339 = smul.addr %s338, 8
      %s340 = scalar_lea.vmem %s1, %s339
      %p341 = pneg %p79
      %p342 = pneg %p76
      %p343 = scmp.lt.s32.totalorder %s25, 1
      %s344 = scalar_select %p343, %s25, 1
      %s345 = smul.addr %s344, 4
      %s346 = scalar_lea.vmem %s2, %s345
      %p347 = pneg %p105
      %p348 = pneg %p102
      %p349 = pneg %p126
      %p350 = pneg %p123
      %p351 = scmp.lt.s32.totalorder %s24, 0
      %s352 = scalar_select %p351, %s24, 0
      %s353 = smul.addr %s352, 4
      %s354 = scalar_lea.vmem %s4, %s353
      %p355 = pneg %p152
      %p356 = pneg %p149
      %p357 = pneg %p173
      %p358 = pneg %p170
      %p359 = pneg %p194
      %p360 = pneg %p191
      %p361 = pneg %p215
      %p362 = pneg %p212
      %p363 = pneg %p236
      %p364 = pneg %p233
      %p365 = pneg %p262
      %p366 = pneg %p259
      %p367 = scmp.lt.s32.totalorder %s24, 0
      %s368 = scalar_select %p367, %s24, 0
      %s369 = smul.addr %s368, 8
      %s370 = scalar_lea.vmem %s9, %s369
      %p371 = scmp.lt.s32.totalorder %s25, 1
      %s372 = scalar_select %p371, %s25, 1
      %s373 = smul.addr %s372, 8
      %s374 = scalar_lea.vmem %s0, %s373
      %p375 = scmp.lt.s32.totalorder %s25, 1
      %s376 = scalar_select %p375, %s25, 1
      %s377 = smul.addr %s376, 8
      %s378 = scalar_lea.vmem %s1, %s377
      %p379 = scmp.lt.s32.totalorder %s25, 1
      %s380 = scalar_select %p379, %s25, 1
      %s381 = smul.addr %s380, 4
      %s382 = scalar_lea.vmem %s2, %s381
      %p383 = scmp.lt.s32.totalorder %s24, 0
      %s384 = scalar_select %p383, %s24, 0
      %s385 = smul.addr %s384, 4
      %s386 = scalar_lea.vmem %s4, %s385
      %p387 = scmp.lt.s32.totalorder %s24, 0
      %s388 = scalar_select %p387, %s24, 0
      %s389 = smul.addr %s388, 8
      %s390 = scalar_lea.vmem %s9, %s389
      %p392 = scmp.eq.s32.totalorder %s25, 0
      // Predicated region
      $region57: #{tpu_custom_call.1} parent=55 // pred_check
        %p393 = pneg %p392
      $region58: #{tpu_custom_call.1} parent=55 // pred_check_branch
        %395 = sbr.rel (%p393) target = $region60
      $region59: #{tpu_custom_call.1} parent=55 // pred_region
        %vm396 = vcmask 64512
        %397 = vst.msk [vmem:[#allocation2] sm:$0xff] %vm396, -1.2676506e+30
        %398 = vst.msk [vmem:[#allocation3] sm:$0xff] %vm396, 0.0
        %399 = vst.msk [vmem:[%s390] sm:$0xff] %vm396, 0.0
        %400 = vst.msk [vmem:[%s390 + $0x8] sm:$0xff] %vm396, 0.0
        %401 = vst.msk [vmem:[%s390 + $0x10] sm:$0xff] %vm396, 0.0
        %402 = vst.msk [vmem:[%s390 + $0x18] sm:$0xff] %vm396, 0.0
      $region60: #{tpu_custom_call.1} parent=55 // pred_fallthru
        _
      %v403 = vld [vmem:[%s378] sm:$0xff]
      %v404 = vld [vmem:[%s6] sm:$0x1]
      %406 = vset.pattern.permute.xlu0 0
      %407 = vperm.xlu0 %406, %v403
      %v408 = vpop.permute.xlu0 %407
      %v411 = vperm.slane %v404, 0
      %v413 = vmul.f32 %v408, %v411
      %v414 = vld [vmem:[%s7] sm:$0x1]
      %v416 = vperm.slane %v414, 0
      %v418 = vadd.f32 %v413, %v416
      %v419 = vand.u32 2147483647, %v418
      %vm420 = vcmp.le.f32.partialorder %v419, 0.7853982
      %vm421 = vcmp.lt.s32.totalorder %v418, 0
      %v422 = vand.u32 %v418, 2139095040
      %v423 = vshrl.u32 %v422, 23
      %v424 = vsub.s32 %v423, 127
      %v425 = vand.u32 2147483647, %v418
      %v426 = vand.u32 %v425, 8388607
      %v427 = vor.u32 %v426, 8388608
      %v428 = vsub.s32 0, %v427
      %v429 = vadd.s32 %v424, 1
      %vm430 = vcmp.gt.s32.totalorder %v429, 0
      %v431 = vsel %vm430, %v429, 0
      %v432 = vshrl.u32 %v431, 5
      %v433 = vand.u32 %v431, 31
      %v434 = vsub.s32 32, %v433
      %v435 = vshrl.u32 683565275, %v434
      %v436 = vshll.u32 683565275, %v433
      %v437 = vshrl.u32 2475754826, %v434
      %v438 = vor.u32 %v436, %v437
      %v439 = vshll.u32 2475754826, %v433
      %v440 = vshrl.u32 2131351028, %v434
      %v441 = vor.u32 %v439, %v440
      %v442 = vshll.u32 2131351028, %v433
      %v443 = vshrl.u32 2102212464, %v434
      %v444 = vor.u32 %v442, %v443
      %v445 = vshll.u32 2102212464, %v433
      %v446 = vshrl.u32 920167782, %v434
      %v447 = vor.u32 %v445, %v446
      %v448 = vshll.u32 920167782, %v433
      %v449 = vshrl.u32 1326507024, %v434
      %v450 = vor.u32 %v448, %v449
      %vm451 = vcmp.lt.s32.totalorder %v432, 1
      %vm452 = vcmp.lt.s32.totalorder %v432, 2
      %vm453 = vcmp.lt.s32.totalorder %v432, 3
      %vm454 = vcmp.lt.s32.totalorder %v432, 4
      %v455 = vsel %vm451, %v435, %v438
      %v456 = vsel %vm454, %v444, 2102212464
      %v457 = vsel %vm453, %v441, %v456
      %v458 = vsel %vm452, %v455, %v457
      %v459 = vsel %vm451, %v438, %v441
      %v460 = vsel %vm454, %v447, 920167782
      %v461 = vsel %vm453, %v444, %v460
      %v462 = vsel %vm452, %v459, %v461
      %v463 = vsel %vm451, %v441, %v444
      %v464 = vsel %vm454, %v450, 1326507024
      %v465 = vsel %vm453, %v447, %v464
      %v466 = vsel %vm452, %v463, %v465
      %v467 = vshll.u32 %v427, 8
      %v468 = vand.u32 %v467, 65535
      %v469 = vshrl.u32 %v467, 16
      %v470 = vand.u32 %v466, 65535
      %v471 = vshrl.u32 %v466, 16
      %v472 = vmul.u32 %v468, %v470
      %v473 = vmul.u32 %v468, %v471
      %v474 = vmul.u32 %v469, %v470
      %v475 = vmul.u32 %v469, %v471
      %v476 = vshll.u32 %v473, 16
      %v477 = vshrl.u32 %v473, 16
      %v478 = vshll.u32 %v474, 16
      %v479 = vshrl.u32 %v474, 16
      %vm480 = vc.u32 %v472, %v476
      %v481 = vsel %vm480, 1, 0
      %v482 = vadd.s32 %v472, %v476
      %v483 = vadd.s32 %v475, %v481
      %vm484 = vc.u32 %v482, %v478
      %v485 = vsel %vm484, 1, 0
      %v486 = vadd.s32 %v482, %v478
      %v487 = vadd.s32 %v483, %v485
      %v488 = vadd.s32 %v487, %v477
      %v489 = vadd.s32 %v488, %v479
      %v490 = vand.u32 %v467, 65535
      %v491 = vshrl.u32 %v467, 16
      %v492 = vand.u32 %v462, 65535
      %v493 = vshrl.u32 %v462, 16
      %v494 = vmul.u32 %v490, %v492
      %v495 = vmul.u32 %v490, %v493
      %v496 = vmul.u32 %v491, %v492
      %v497 = vmul.u32 %v491, %v493
      %v498 = vshll.u32 %v495, 16
      %v499 = vshrl.u32 %v495, 16
      %v500 = vshll.u32 %v496, 16
      %v501 = vshrl.u32 %v496, 16
      %vm502 = vc.u32 %v494, %v498
      %v503 = vsel %vm502, 1, 0
      %v504 = vadd.s32 %v494, %v498
      %v505 = vadd.s32 %v497, %v503
      %vm506 = vc.u32 %v504, %v500
      %v507 = vsel %vm506, 1, 0
      %v508 = vadd.s32 %v504, %v500
      %v509 = vadd.s32 %v505, %v507
      %v510 = vadd.s32 %v509, %v499
      %v511 = vadd.s32 %v510, %v501
      %v512 = vmul.u32 %v467, %v458
      %v513 = vadd.s32 %v489, %v508
      %vm514 = vc.u32 %v489, %v508
      %v515 = vadd.s32 %v511, 1
      %v516 = vsel %vm514, %v515, %v511
      %v517 = vadd.s32 %v512, %v516
      %v518 = vadd.s32 %v517, 536870912
      %v519 = vshrl.u32 %v518, 30
      %v520 = vshll.u32 %v519, 30
      %v521 = vsub.s32 %v517, %v520
      %vm522 = vcmp.lt.s32.totalorder %v521, 0
      %v523 = vsub.s32 0, %v521
      %v524 = vsel %vm522, %v523, %v521
      %v525 = vclz %v524
      %v526 = vsub.s32 %v525, 2
      %vm527 = vcmp.gt.s32.totalorder 0, %v526
      %v528 = vsel %vm527, 0, %v526
      %v529 = vsub.s32 32, %v528
      %v530 = vshll.u32 %v521, %v528
      %v531 = vshrl.u32 %v513, %v529
      %v532 = vor.u32 %v530, %v531
      %v533 = vsub.s32 4294967266, %v528
      %v534 = vadd.s32 %v533, 127
      %v535 = vshll.u32 %v534, 23
      %v536 = vor.u32 4788187, %v535
      %v537 = vand.u32 2147483647, %v536
      %v539 = vcvt.s32.f32 %v532
      %v540 = vmul.f32 %v539, %v537
      %v541 = vxor.u32 %v540, 2147483648
      %v542 = vsel %vm421, %v541, %v540
      %v543 = vsub.s32 4, %v519
      %v544 = vsel %vm421, %v543, %v519
      %v545 = vsel %vm420, %v418, %v542
      %v546 = vsel %vm420, 0, %v544
      %v547 = vmul.f32 %v545, %v545
      %v548 = vmul.f32 %v547, -0.001358992
      %v549 = vadd.f32 %v548, 0.041655596
      %v550 = vmul.f32 %v547, %v549
      %v551 = vadd.f32 %v550, -0.4999988
      %v552 = vmul.f32 %v547, %v551
      %v553 = vadd.f32 1.0, %v552
      %v554 = vmul.f32 %v545, %v545
      %v555 = vmul.f32 %v554, -0.00019511016
      %v556 = vadd.f32 %v555, 0.008332121
      %v557 = vmul.f32 %v554, %v556
      %v558 = vadd.f32 %v557, -0.16666654
      %v559 = vmul.f32 %v554, %v558
      %v560 = vadd.f32 %v559, 1.0
      %v561 = vmul.f32 %v560, %v545
      %vm562 = vweird.f32 %v418
      %v563 = vand.u32 %v546, 3
      %vm564 = vcmp.lt.s32.totalorder %v563, 2
      %vm565 = vcmp.eq.s32.totalorder %v563, 0
      %v566 = vxor.u32 %v561, 2147483648
      %v567 = vsel %vm565, %v553, %v566
      %vm568 = vcmp.eq.s32.totalorder %v563, 2
      %v569 = vxor.u32 %v553, 2147483648
      %v570 = vsel %vm568, %v569, %v561
      %v571 = vsel %vm564, %v567, %v570
      %v572 = vsel %vm562, nan, %v571
      %v573 = vpack.c.bf16 %v572, %v572
      %v574 = vld [vmem:[%s5] sm:$0xf]
      %v575 = vld [vmem:[%s382] sm:$0xf]
      %v576 = vld [vmem:[%s5 + $0x4] sm:$0xf]
      %v577 = vld [vmem:[%s5 + $0x8] sm:$0xf]
      %v580 = vunpack.c.l.b16 %v576
      %v581 = vunpack.c.l.b16 %v577
      %v582 = vpack.c.b16 %v581, %v580
      %vm584 = vcmask 130048
      %v586 = vsel %vm584, %v575, 0
      %588 = vmatpush.bf16.msra.mxu0 0
      %589 = vmatpush.bf16.msra.mxu0 0
      %590 = vmatpush.bf16.msra.mxu0 0
      %591 = vmatpush.bf16.msra.mxu0 0
      %592 = vmatpush.bf16.msra.mxu0 0
      %593 = vmatpush.bf16.msra.mxu0 0
      %594 = vmatpush.bf16.msra.mxu0 0
      %595 = vmatpush.bf16.msra.mxu0 %v582
      %596 = vmatmul.bf16.gmra.mxu0 %v586
      %v597 = vpop.f32.mrf.mxu0
      %v598 = vadd.f32 0.0, %v597
      %v599 = vpop.f32.mrf.mxu0
      %600 = vdwg.mxu0
      %vm601 = vcmask 64512
      %v603 = vsel %vm601, %v573, 0
      %vm605 = vcmask 1043456
      %v607 = vsel %vm605, %v574, 0
      %609 = vmatpush.bf16.msra.mxu0 0
      %610 = vmatpush.bf16.msra.mxu0 0
      %611 = vmatpush.bf16.msra.mxu0 0
      %612 = vmatpush.bf16.msra.mxu0 0
      %613 = vmatpush.bf16.msra.mxu0 0
      %614 = vmatpush.bf16.msra.mxu0 0
      %615 = vmatpush.bf16.msra.mxu0 0
      %616 = vmatpush.bf16.msra.mxu0 %v607
      %617 = vmatmul.bf16.gmra.mxu0 %v603
      %v618 = vpop.f32.mrf.mxu0
      %v619 = vadd.f32 %v598, %v618
      %v620 = vpop.f32.mrf.mxu0
      %621 = vdwg.mxu0
      %v622 = vld [vmem:[%s374] sm:$0xff]
      %s623 = smul.u32 %s24, 8
      %v624 = vlaneseq
      %v625 = vand.u32 %v624, 127
      %626 = vset.pattern.permute.xlu0 1
      %627 = vperm.xlu0 %626, %v622
      %v628 = vpop.permute.xlu0 %627
      %vm629 = vcmp.eq.s32.totalorder %v628, %v625
      %v630 = vsel %vm629, 1, 0
      %v631 = vcvt.s32.f32 %v630
      %v632 = vpack.c.bf16 %v631, %v631
      %v633 = vstv %s623
      %v634 = vadd.s32 %v625, %v633
      %635 = vset.pattern.permute.xlu0 0
      %636 = vperm.xlu0 %635, %v622
      %v637 = vpop.permute.xlu0 %636
      %vm638 = vcmp.eq.s32.totalorder %v637, %v634
      %v639 = vsel %vm638, 1, 0
      %v640 = vcvt.s32.f32 %v639
      %v641 = vpack.c.bf16 %v640, %v640
      %v642 = vld [vmem:[%s386] sm:$0xf]
      %v644 = vsel %vm601, %v641, 0
      %v647 = vsel %vm605, %v642, 0
      %649 = vmatpush.bf16.msra.mxu0 0
      %650 = vmatpush.bf16.msra.mxu0 0
      %651 = vmatpush.bf16.msra.mxu0 0
      %652 = vmatpush.bf16.msra.mxu0 0
      %653 = vmatpush.bf16.msra.mxu0 0
      %654 = vmatpush.bf16.msra.mxu0 0
      %655 = vmatpush.bf16.msra.mxu0 0
      %656 = vmatpush.bf16.msra.mxu0 %v647
      %657 = vmatmul.bf16.gmra.mxu0 %v644
      %v658 = vpop.f32.mrf.mxu0
      %v659 = vadd.f32 0.0, %v658
      %v660 = vpop.f32.mrf.mxu0
      %661 = vdwg.mxu0
      %v662 = vld [vmem:[%s3] sm:$0xf]
      %v664 = vsel %vm601, %v632, 0
      %v667 = vsel %vm605, %v662, 0
      %669 = vmatpush.bf16.msra.mxu0 0
      %670 = vmatpush.bf16.msra.mxu0 0
      %671 = vmatpush.bf16.msra.mxu0 0
      %672 = vmatpush.bf16.msra.mxu0 0
      %673 = vmatpush.bf16.msra.mxu0 0
      %674 = vmatpush.bf16.msra.mxu0 0
      %675 = vmatpush.bf16.msra.mxu0 0
      %676 = vmatpush.bf16.msra.mxu0 %v667
      %677 = vmatmul.bf16.gmra.mxu0 %v664
      %v678 = vpop.f32.mrf.mxu0
      %v679 = vadd.f32 0.0, %v678
      %v680 = vpop.f32.mrf.mxu0
      %681 = vdwg.mxu0
      %v682 = vadd.f32 %v679, %v619
      %684 = vrot.lane.b32.xlu0 %v619, 32
      %v685 = vpop.permute.xlu0 %684
      %v687 = vadd.f32 %v679, %v685
      %v688 = vmul.f32 %v659, %v682
      %v689 = vmul.f32 %v688, 0.5
      %v690 = vpack.c.bf16 %v689, %v689
      %v691 = vld [vmem:[%s8] sm:$0xf]
      %v692 = vld [vmem:[%s8 + $0x4] sm:$0xf]
      %v693 = vld [vmem:[%s8 + $0x8] sm:$0xf]
      %v694 = vld [vmem:[%s8 + $0xc] sm:$0xf]
      %v699 = vunpack.c.l.b16 %v691
      %v700 = vunpack.c.l.b16 %v692
      %v701 = vunpack.c.l.b16 %v693
      %v702 = vunpack.c.l.b16 %v694
      %v703 = vpack.c.b16 %v700, %v699
      %v704 = vpack.c.b16 %v702, %v701
      %vm707 = vcmask 261120
      %v709 = vsel %vm707, %v690, 0
      %711 = vmatpush.bf16.msra.mxu0 0
      %712 = vmatpush.bf16.msra.mxu0 0
      %713 = vmatpush.bf16.msra.mxu0 0
      %714 = vmatpush.bf16.msra.mxu0 0
      %715 = vmatpush.bf16.msra.mxu0 0
      %716 = vmatpush.bf16.msra.mxu0 0
      %717 = vmatpush.bf16.msra.mxu0 %v704
      %718 = vmatpush.bf16.msra.mxu0 %v703
      %719 = vmatmul.bf16.gmra.mxu0 %v709
      %v720 = vpop.f32.mrf.mxu0
      %v721 = vadd.f32 0.0, %v720
      %v722 = vpop.f32.mrf.mxu0
      %723 = vdwg.mxu0
      %725 = vset.pattern.permute.xlu0 0
      %726 = vperm.xlu0 %725, %v721
      %v727 = vpop.permute.xlu0 %726
      %v729 = vsel %vm638, %v727, -1.2676506e+30
      %v730 = vsel %vm601, %v729, -inf
      %v731 = vrot.slane %v730, 4
      %v732 = vmax.f32 %v730, %v731
      %v733 = vrot.slane %v732, 2
      %v734 = vmax.f32 %v732, %v733
      %v735 = vrot.slane %v734, 1
      %v736 = vmax.f32 %v734, %v735
      %737 = vset.pattern.permute.xlu0 1
      %738 = vperm.xlu0 %737, %v721
      %v739 = vpop.permute.xlu0 %738
      %v741 = vsel %vm638, %v739, -1.2676506e+30
      %v742 = vsel %vm601, %v741, -inf
      %v743 = vrot.slane %v742, 4
      %v744 = vmax.f32 %v742, %v743
      %v745 = vrot.slane %v744, 2
      %v746 = vmax.f32 %v744, %v745
      %v747 = vrot.slane %v746, 1
      %v748 = vmax.f32 %v746, %v747
      %749 = vset.pattern.permute.xlu0 2
      %750 = vperm.xlu0 %749, %v721
      %v751 = vpop.permute.xlu0 %750
      %v753 = vsel %vm638, %v751, -1.2676506e+30
      %v754 = vsel %vm601, %v753, -inf
      %v755 = vrot.slane %v754, 4
      %v756 = vmax.f32 %v754, %v755
      %v757 = vrot.slane %v756, 2
      %v758 = vmax.f32 %v756, %v757
      %v759 = vrot.slane %v758, 1
      %v760 = vmax.f32 %v758, %v759
      %761 = vset.pattern.permute.xlu0 3
      %762 = vperm.xlu0 %761, %v721
      %v763 = vpop.permute.xlu0 %762
      %v765 = vsel %vm638, %v763, -1.2676506e+30
      %v766 = vsel %vm601, %v765, -inf
      %v767 = vrot.slane %v766, 4
      %v768 = vmax.f32 %v766, %v767
      %v769 = vrot.slane %v768, 2
      %v770 = vmax.f32 %v768, %v769
      %v771 = vrot.slane %v770, 1
      %v772 = vmax.f32 %v770, %v771
      %773 = vset.pattern.permute.xlu0 4
      %774 = vperm.xlu0 %773, %v721
      %v775 = vpop.permute.xlu0 %774
      %v777 = vsel %vm638, %v775, -1.2676506e+30
      %v778 = vsel %vm601, %v777, -inf
      %v779 = vrot.slane %v778, 4
      %v780 = vmax.f32 %v778, %v779
      %v781 = vrot.slane %v780, 2
      %v782 = vmax.f32 %v780, %v781
      %v783 = vrot.slane %v782, 1
      %v784 = vmax.f32 %v782, %v783
      %785 = vset.pattern.permute.xlu0 5
      %786 = vperm.xlu0 %785, %v721
      %v787 = vpop.permute.xlu0 %786
      %v789 = vsel %vm638, %v787, -1.2676506e+30
      %v790 = vsel %vm601, %v789, -inf
      %v791 = vrot.slane %v790, 4
      %v792 = vmax.f32 %v790, %v791
      %v793 = vrot.slane %v792, 2
      %v794 = vmax.f32 %v792, %v793
      %v795 = vrot.slane %v794, 1
      %v796 = vmax.f32 %v794, %v795
      %797 = vset.pattern.permute.xlu0 6
      %798 = vperm.xlu0 %797, %v721
      %v799 = vpop.permute.xlu0 %798
      %v801 = vsel %vm638, %v799, -1.2676506e+30
      %v802 = vsel %vm601, %v801, -inf
      %v803 = vrot.slane %v802, 4
      %v804 = vmax.f32 %v802, %v803
      %v805 = vrot.slane %v804, 2
      %v806 = vmax.f32 %v804, %v805
      %v807 = vrot.slane %v806, 1
      %v808 = vmax.f32 %v806, %v807
      %809 = vset.pattern.permute.xlu0 7
      %810 = vperm.xlu0 %809, %v721
      %v811 = vpop.permute.xlu0 %810
      %v813 = vsel %vm638, %v811, -1.2676506e+30
      %v814 = vsel %vm601, %v813, -inf
      %v815 = vrot.slane %v814, 4
      %v816 = vmax.f32 %v814, %v815
      %v817 = vrot.slane %v816, 2
      %v818 = vmax.f32 %v816, %v817
      %v819 = vrot.slane %v818, 1
      %v820 = vmax.f32 %v818, %v819
      %vm821 = vcmask 1040384
      %v822 = vsel %vm821, %v736, %v748
      %vm823 = vcmask 1041408
      %v824 = vsel %vm823, %v822, %v760
      %vm825 = vcmask 1042432
      %v826 = vsel %vm825, %v824, %v772
      %v827 = vsel %vm605, %v826, %v784
      %vm828 = vcmask 1044480
      %v829 = vsel %vm828, %v827, %v796
      %vm830 = vcmask 1045504
      %v831 = vsel %vm830, %v829, %v808
      %vm832 = vcmask 1046528
      %v833 = vsel %vm832, %v831, %v820
      %v834 = vld [vmem:[#allocation2] sm:$0xff]
      %v835 = vmax.f32 %v834, %v833
      %v836 = vpack.c.bf16 %v835, %v835
      %v837 = vunpack.c.l.bf16 %v836
      %v838 = vsub.f32 %v834, %v837
      %v839 = vmul.f32 %v838, 1.442695
      %v840 = vpow.pop %v839
      %841 = vst.msk [vmem:[#allocation2] sm:$0xff] %vm601, %v837
      %v843 = vsel %vm601, %v836, 0
      %845 = vmatpush.bf16.xpose.msra.mxu0 0
      %846 = vmatpush.bf16.xpose.msra.mxu0 0
      %847 = vmatpush.bf16.xpose.msra.mxu0 0
      %848 = vmatpush.bf16.xpose.msra.mxu0 0
      %849 = vmatpush.bf16.xpose.msra.mxu0 0
      %850 = vmatpush.bf16.xpose.msra.mxu0 0
      %851 = vmatpush.bf16.xpose.msra.mxu0 0
      %852 = vmatpush.bf16.xpose.msra.mxu0 %v843
      %853 = vmatmul.bf16.gmra.mxu0 %v644
      %v854 = vpop.f32.mrf.mxu0
      %v855 = vadd.f32 0.0, %v854
      %v856 = vpop.f32.mrf.mxu0
      %857 = vdwg.mxu0
      %vm858 = vcmp.ge.s32.totalorder %v622, %v633
      %s859 = sadd.s32 %s623, 8
      %v860 = vstv %s859
      %vm861 = vcmp.lt.s32.totalorder %v622, %v860
      %vm862 = vmand %vm858, %vm861
      %v863 = vsub.f32 %v721, %v855
      %v864 = vmul.f32 %v863, 1.442695
      %v865 = vpow.pop %v864
      %v866 = vsel %vm862, 1, 0
      %867 = vset.pattern.permute.xlu0 0
      %868 = vperm.xlu0 %867, %v866
      %v869 = vpop.permute.xlu0 %868
      %vm870 = vcmp.eq.s32.totalorder %v869, 1
      %v871 = vsel %vm870, %v865, 0.0
      %873 = vset.pattern.permute.xlu0 0
      %874 = vperm.xlu0 %873, %v871
      %v875 = vpop.permute.xlu0 %874
      %877 = vset.pattern.permute.xlu0 1
      %878 = vperm.xlu0 %877, %v871
      %v879 = vpop.permute.xlu0 %878
      %881 = vset.pattern.permute.xlu0 2
      %882 = vperm.xlu0 %881, %v871
      %v883 = vpop.permute.xlu0 %882
      %885 = vset.pattern.permute.xlu0 3
      %886 = vperm.xlu0 %885, %v871
      %v887 = vpop.permute.xlu0 %886
      %889 = vset.pattern.permute.xlu0 4
      %890 = vperm.xlu0 %889, %v871
      %v891 = vpop.permute.xlu0 %890
      %893 = vset.pattern.permute.xlu0 5
      %894 = vperm.xlu0 %893, %v871
      %v895 = vpop.permute.xlu0 %894
      %897 = vset.pattern.permute.xlu0 6
      %898 = vperm.xlu0 %897, %v871
      %v899 = vpop.permute.xlu0 %898
      %901 = vset.pattern.permute.xlu0 7
      %902 = vperm.xlu0 %901, %v871
      %v903 = vpop.permute.xlu0 %902
      %vm905 = vcmask 31744
      %v906 = vsel %vm905, %v875, %v879
      %v907 = vsel %vm601, %v906, %v883
      %vm908 = vcmask 97280
      %v909 = vsel %vm908, %v907, %v887
      %v910 = vsel %vm584, %v909, %v891
      %vm911 = vcmask 162816
      %v912 = vsel %vm911, %v910, %v895
      %vm913 = vcmask 195584
      %v914 = vsel %vm913, %v912, %v899
      %vm915 = vcmask 228352
      %v916 = vsel %vm915, %v914, %v903
      %918 = vrot.lane.b32.xlu0 %v916, 32
      %v919 = vpop.permute.xlu0 %918
      %v921 = vmul.f32 %v687, %v919
      %v922 = vpack.c.bf16 %v921, %v921
      %v923 = vpack.c.bf16 %v871, %v871
      %v925 = vunpack.c.l.b16 %v922
      %v926 = vpack.c.b16 %v925, %v925
      %927 = vrot.lane.b32.xlu0 %v926, 96
      %v928 = vpop.permute.xlu0 %927
      %v930 = vunpack.c.l.b16 %v923
      %v931 = vpack.c.b16 %v930, %v930
      %932 = vrot.lane.b32.xlu0 %v931, 32
      %v933 = vpop.permute.xlu0 %932
      %v936 = vsel %vm707, %v928, %v933
      %938 = vxpose.xlu0.c.b16.start [1/8] %v936, 128
      %939 = vxpose.xlu0.c.b16.cont [2/8] 0, 128
      %940 = vxpose.xlu0.c.b16.cont [3/8] 0, 128
      %941 = vxpose.xlu0.c.b16.cont [4/8] 0, 128
      %942 = vxpose.xlu0.c.b16.cont [5/8] 0, 128
      %943 = vxpose.xlu0.c.b16.cont [6/8] 0, 128
      %944 = vxpose.xlu0.c.b16.cont [7/8] 0, 128
      %945 = vxpose.xlu0.c.b16.end [8/8] 0, 128
      %v946 = vpop.trf.xlu0
      %v947 = vpop.trf.xlu0
      %v948 = vpop.trf.xlu0
      %v949 = vpop.trf.xlu0
      %v950 = vpop.trf.xlu0
      %v951 = vpop.trf.xlu0
      %v952 = vpop.trf.xlu0
      %v953 = vpop.trf.xlu0
      %v955 = vsel %vm601, %v946, 0
      %v958 = vsel %vm601, %v947, 0
      %v961 = vsel %vm601, %v948, 0
      %v963 = vsel %vm605, %v641, 0
      %965 = vmatpush.bf16.msra.mxu0 0
      %966 = vmatpush.bf16.msra.mxu0 0
      %967 = vmatpush.bf16.msra.mxu0 0
      %968 = vmatpush.bf16.msra.mxu0 0
      %969 = vmatpush.bf16.msra.mxu0 0
      %970 = vmatpush.bf16.msra.mxu0 0
      %971 = vmatpush.bf16.msra.mxu0 0
      %972 = vmatpush.bf16.msra.mxu0 %v963
      %973 = vmatmul.bf16.gmra.mxu0 %v955
      %v974 = vpop.f32.mrf.mxu0
      %v975 = vadd.f32 0.0, %v974
      %v976 = vpop.f32.mrf.mxu0
      %v977 = vadd.f32 0.0, %v976
      %978 = vmatmul.bf16.gmra.mxu0 %v958
      %v979 = vpop.f32.mrf.mxu0
      %v980 = vadd.f32 0.0, %v979
      %v981 = vpop.f32.mrf.mxu0
      %v982 = vadd.f32 0.0, %v981
      %983 = vmatmul.bf16.gmra.mxu0 %v961
      %v984 = vpop.f32.mrf.mxu0
      %v985 = vadd.f32 0.0, %v984
      %v986 = vpop.f32.mrf.mxu0
      %987 = vdwg.mxu0
      %v988 = vld [vmem:[#allocation3] sm:$0xff]
      %v989 = vmul.f32 %v840, %v988
      %v990 = vadd.f32 %v989, %v985
      %991 = vst.msk [vmem:[#allocation3] sm:$0xff] %vm601, %v990
      %v992 = vperm.slane %v840, 0
      %v993 = vperm.slane %v840, 1
      %v994 = vperm.slane %v840, 2
      %v995 = vperm.slane %v840, 3
      %v996 = vperm.slane %v840, 4
      %v997 = vperm.slane %v840, 5
      %v998 = vperm.slane %v840, 6
      %v999 = vperm.slane %v840, 7
      %v1000 = vsel %vm605, %v992, %v993
      %v1001 = vsel %vm605, %v994, %v995
      %v1002 = vsel %vm605, %v996, %v997
      %v1003 = vsel %vm605, %v998, %v999
      %v1004 = vld [vmem:[%s390] sm:$0xff]
      %v1005 = vld [vmem:[%s390 + $0x8] sm:$0xff]
      %v1006 = vld [vmem:[%s390 + $0x10] sm:$0xff]
      %v1007 = vld [vmem:[%s390 + $0x18] sm:$0xff]
      %v1008 = vmul.f32 %v1000, %v1004
      %v1009 = vmul.f32 %v1001, %v1005
      %v1010 = vmul.f32 %v1002, %v1006
      %v1011 = vmul.f32 %v1003, %v1007
      %v1012 = vadd.f32 %v1008, %v975
      %v1013 = vadd.f32 %v1009, %v977
      %v1014 = vadd.f32 %v1010, %v980
      %v1015 = vadd.f32 %v1011, %v982
      %1016 = vst.msk [vmem:[%s390] sm:$0xff] %vm601, %v1012
      %1017 = vst.msk [vmem:[%s390 + $0x8] sm:$0xff] %vm601, %v1013
      %1018 = vst.msk [vmem:[%s390 + $0x10] sm:$0xff] %vm601, %v1014
      %1019 = vst.msk [vmem:[%s390 + $0x18] sm:$0xff] %vm601, %v1015
      %p1020 = scmp.eq.s32.totalorder %s25, 1
      // Predicated region
      $region61: #{tpu_custom_call.1} parent=55 // pred_check
        %p1021 = pneg %p1020
      $region62: #{tpu_custom_call.1} parent=55 // pred_check_branch
        %1023 = sbr.rel (%p1021) target = $region64
      $region63: #{tpu_custom_call.1} parent=55 // pred_region
        %v1024 = vld [vmem:[#allocation3] sm:$0xff]
        %vm1025 = vcmp.gt.f32.partialorder %v1024, 0.0
        %v1026 = vmax.f32 %v1024, 1e-30
        %v1027 = vrcp.pop %v1026
        %v1028 = vsel %vm1025, %v1027, 0.0
        %v1029 = vld [vmem:[%s390] sm:$0xff]
        %v1030 = vld [vmem:[%s390 + $0x8] sm:$0xff]
        %v1031 = vld [vmem:[%s390 + $0x10] sm:$0xff]
        %v1032 = vld [vmem:[%s390 + $0x18] sm:$0xff]
        %v1033 = vperm.slane %v1028, 0
        %v1034 = vperm.slane %v1028, 1
        %v1035 = vperm.slane %v1028, 2
        %v1036 = vperm.slane %v1028, 3
        %v1037 = vperm.slane %v1028, 4
        %v1038 = vperm.slane %v1028, 5
        %v1039 = vperm.slane %v1028, 6
        %v1040 = vperm.slane %v1028, 7
        %v1041 = vsel %vm605, %v1033, %v1034
        %v1042 = vsel %vm605, %v1035, %v1036
        %v1043 = vsel %vm605, %v1037, %v1038
        %v1044 = vsel %vm605, %v1039, %v1040
        %v1045 = vmul.f32 %v1029, %v1041
        %v1046 = vmul.f32 %v1030, %v1042
        %v1047 = vmul.f32 %v1031, %v1043
        %v1048 = vmul.f32 %v1032, %v1044
        %1049 = vst.msk [vmem:[%s390] sm:$0xff] %vm601, %v1045
        %1050 = vst.msk [vmem:[%s390 + $0x8] sm:$0xff] %vm601, %v1046
        %1051 = vst.msk [vmem:[%s390 + $0x10] sm:$0xff] %vm601, %v1047
        %1052 = vst.msk [vmem:[%s390 + $0x18] sm:$0xff] %vm601, %v1048
      $region64: #{tpu_custom_call.1} parent=55 // pred_fallthru
        _
      %p1053 = scmp.lt.s32.totalorder %s24, 0
      %s1054 = scalar_select %p1053, %s24, 0
      %s1055 = smul.addr %s1054, 8
      %s1056 = scalar_lea.vmem %s9, %s1055
      // Predicated region
      $region65: #{tpu_custom_call.1} parent=55 // pred_check
        %p1057 = pneg %p259
      $region66: #{tpu_custom_call.1} parent=55 // pred_check_branch
        %1059 = sbr.rel (%p1057) target = $region68
      $region67: #{tpu_custom_call.1} parent=55 // pred_region
        _
      $region68: #{tpu_custom_call.1} parent=55 // pred_fallthru
        _
      // Predicated region
      $region69: #{tpu_custom_call.1} parent=55 // pred_check
        %p1060 = pneg %p259
      $region70: #{tpu_custom_call.1} parent=55 // pred_check_branch
        %1062 = sbr.rel (%p1060) target = $region72
      $region71: #{tpu_custom_call.1} parent=55 // pred_region
        %p1063 = scmp.lt.s32.totalorder %s24, 0
        %s1064 = scalar_select %p1063, %s24, 0
        %s1065 = smul.addr %s1064, 8
        %s1066 = scalar_lea.vmem %s9, %s1065
      $region72: #{tpu_custom_call.1} parent=55 // pred_fallthru
        _
    $region56: #{tpu_custom_call.1} parent=5 // pred_fallthru
      _
    %p1067 = scmp.le.s32.totalorder 2, %s15
    // Predicated region
    $region73: #{tpu_custom_call.1} parent=5 // pred_check
      %p1068 = pneg %p1067
    $region74: #{tpu_custom_call.1} parent=5 // pred_check_branch
      %1070 = sbr.rel (%p1068) target = $region76
    $region75: #{tpu_custom_call.1} parent=5 // pred_region
      %s1071 = ssub.s32 %s15, 2
    $region76: #{tpu_custom_call.1} parent=5 // pred_fallthru
      _
  $region6: #{tpu_custom_call.1} parent=0 // loop_footer
    %s19 = sadd.s32 1, %s15
  $region7: #{tpu_custom_call.1} parent=0 // loop_footer_branch
    %14 = sbr.rel target = $region3
  $region8: #{tpu_custom_call.1} parent=0 // loop_exit
    _

</llo_original>
